<compile_context>
chip_gen: v7x
topology: tpu7x:2x2x1
jax: 0.10.0
libtpu: 0.0.40
codegen_flags: <defaults>
</compile_context>

<pallas_src>
import functools

import numpy as np
import jax
import jax.numpy as jnp
from jax.experimental import pallas as pl
from jax.experimental.pallas import tpu as pltpu


# ----------------------------- helpers -----------------------------

def _rup(x, m):
    return ((x + m - 1) // m) * m


def _pad2(a, rows, cols):
    return jnp.pad(a, ((0, rows - a.shape[0]), (0, cols - a.shape[1])))


def _vmem_capacity():
    try:
        return int(pltpu.get_tpu_info().vmem_capacity_bytes)
    except Exception:
        return 64 << 20          # conservative fallback (v7x per-TensorCore VMEM)


def _vmem_limit(bytes_needed):
    cap = _vmem_capacity()
    want = int(bytes_needed) + (8 << 20)     # headroom for Mosaic internal scratch / sems
    return int(max(16 << 20, min(int(0.75 * cap), want)))


# ----------------------------- kernels -----------------------------

def _attn_gru_kernel(x_ref, h_ref, enc_ref, wh_ref, maskb_ref,
                     wdec_ref, v_ref, w_in_ref, w_hh_ref, b_ih_ref, b_hh_ref,
                     hnew_ref, fcin_ref,
                     dw_sc, m_sc, l_sc, ctx_sc,
                     *, Ep, Hp, ctx_mxu, approx_recip):
    """Bahdanau attention streamed over S tiles (online softmax) + fused single GRU step."""
    f32 = jnp.float32
    s = pl.program_id(0)
    mdt = x_ref.dtype

    @pl.when(s == 0)
    def _init():
        # decoder-hidden projection (step-variant, tile-invariant) computed once
        dw_sc[...] = jnp.dot(h_ref[...].astype(mdt), wdec_ref[...],
                             preferred_element_type=f32)
        m_sc[...] = jnp.full_like(m_sc, -jnp.inf)
        l_sc[...] = jnp.zeros_like(l_sc)
        ctx_sc[...] = jnp.zeros_like(ctx_sc)

    # ---- attention scores for this S tile ----
    act = jnp.tanh(dw_sc[...][:, None, :] + wh_ref[...].astype(f32))      # (Bp, tS, Hp)
    # TODO(synk): for very large S tiles this cross-lane reduce could be moved onto the MXU
    # (act.reshape(Bp*tS, Hp) @ v column) to free the XLU; negligible at these sizes.
    energy = jnp.sum(act * v_ref[...], axis=-1)                           # (Bp, tS)
    scores = energy + maskb_ref[...]                  # additive -1e9 mask (no -inf path)

    # ---- online softmax merge into (m, l, ctx) scratch ----
    m_prev = m_sc[...]
    m_new = jnp.maximum(m_prev, jnp.max(scores, axis=-1, keepdims=True))  # (Bp, 1)
    alpha = jnp.exp(m_prev - m_new)
    p = jnp.exp(scores - m_new)                                           # (Bp, tS)
    l_sc[...] = alpha * l_sc[...] + jnp.sum(p, axis=-1, keepdims=True)
    if ctx_mxu:
        # MXU path for large tiles: batched (1 x tS) . (tS x Hp)
        ctx_part = jax.lax.dot_general(
            p.astype(mdt)[:, None, :], enc_ref[...],
            dimension_numbers=(((2,), (1,)), ((0,), (0,))),
            preferred_element_type=f32)[:, 0, :]
    else:
        # tiny tiles: VPU mul + sublane reduce
        ctx_part = jnp.sum(p[:, :, None] * enc_ref[...].astype(f32), axis=1)
    ctx_sc[...] = alpha * ctx_sc[...] + ctx_part
    m_sc[...] = m_new

    # ---- fused single GRU step + fc-input assembly on the last S tile ----
    @pl.when(s == pl.num_programs(0) - 1)
    def _finish():
        context = ctx_sc[...] * pl.reciprocal(l_sc[...], approx=approx_recip)   # (Bp, Hp) f32
        x = x_ref[...]                                                          # (Bp, Ep) mdt
        h = h_ref[...]                                                          # (Bp, Hp) f32
        hm = h.astype(mdt)
        dec_in = jnp.concatenate([x, context.astype(mdt)], axis=-1)             # (Bp, Ep+Hp)
        gi = jnp.dot(dec_in, w_in_ref[...], preferred_element_type=f32) + b_ih_ref[...]
        gh = jnp.dot(hm, w_hh_ref[...], preferred_element_type=f32) + b_hh_ref[...]
        r = jax.nn.sigmoid(gi[:, :Hp] + gh[:, :Hp])
        zg = jax.nn.sigmoid(gi[:, Hp:2 * Hp] + gh[:, Hp:2 * Hp])
        n = jnp.tanh(gi[:, 2 * Hp:] + r * gh[:, 2 * Hp:])
        # padded lanes of h/bias/weights are zero => padded lanes of h_new stay zero
        h_new = (1.0 - zg) * n + zg * h                                         # (Bp, Hp) f32

        hnew_ref[...] = h_new
        # fc input = [x | h_new | context] in lane-aligned 128-multiple slots
        fcin_ref[:, :Ep] = x
        fcin_ref[:, Ep:Ep + Hp] = h_new.astype(mdt)
        fcin_ref[:, Ep + Hp:] = context.astype(mdt)


def _fc_kernel(fcin_ref, w_ref, b_ref, z_ref):
    z_ref[...] = (jnp.dot(fcin_ref[...], w_ref[...], preferred_element_type=jnp.float32)
                  + b_ref[...])


def _fc_int8_kernel(fcin_ref, wq_ref, scale_ref, b_ref, z_ref):
    # int8 weight stream, dequant via per-output-column scale applied AFTER the matmul.
    w = wq_ref[...].astype(jnp.float32).astype(fcin_ref.dtype)
    z = jnp.dot(fcin_ref[...], w, preferred_element_type=jnp.float32)
    z_ref[...] = z * scale_ref[...] + b_ref[...]


# ----------------------------- params -----------------------------

def init_params(key, vocab, emb_dim, hidden_size, enc_bidirectional=True, num_layers=1):
    k = 2 if enc_bidirectional else 1
    H = k * num_layers * hidden_size
    E, V = emb_dim, vocab
    keys = jax.random.split(key, 12)

    def w(k_, shape, scale=0.1):
        return jax.random.normal(k_, shape, dtype=jnp.float32) * scale

    return dict(
        embedding=w(keys[0], (V, E)),
        enc_W=w(keys[1], (H, H)), enc_b=w(keys[2], (H,)),          # enc_hidden_layer
        dec_W=w(keys[3], (H, H)), dec_b=w(keys[4], (H,)),          # dec_hidden_layer
        v_W=w(keys[5], (1, H)),                                    # proj_vector (no bias)
        gru_W_ih=w(keys[6], (3 * H, E + H)),                       # gates [r, z, n]
        gru_W_hh=w(keys[7], (3 * H, H)),
        gru_b_ih=w(keys[8], (3 * H,)),
        gru_b_hh=w(keys[9], (3 * H,)),
        fc_W=w(keys[10], (V, E + 2 * H)), fc_b=w(keys[11], (V,)),
    )


# ----------------------------- prepare (hoisted, run once) -----------------------------

def prepare_weights(params, matmul_dtype=jnp.bfloat16, v_tile=1024, fc_int8=False):
    """One-time weight fusion / padding / casting (NOT per decode step)."""
    f32 = jnp.float32
    mdt = jnp.dtype(matmul_dtype)
    emb = params['embedding']
    E = emb.shape[1]
    H = params['dec_W'].shape[0]
    V = params['fc_W'].shape[0]
    Ep, Hp = _rup(E, 128), _rup(H, 128)
    tv = min(_rup(int(v_tile), 128), _rup(V, 128))                 # fc lane tile (mult of 128)
    Vp = _rup(V, tv)
    Kin, Kfc = Ep + Hp, Ep + 2 * Hp

    wdec_p = _pad2(params['dec_W'].T, Hp, Hp).astype(mdt)
    v_vpu = _pad2(params['v_W'], 1, Hp).astype(f32)                # stays f32 (VPU path)

    # fused GRU weights: gate blocks [r|z|n], each lane-padded to Hp (128-aligned slices)
    W_ih_T = params['gru_W_ih'].T                                  # (E+H, 3H)
    W_hh_T = params['gru_W_hh'].T                                  # (H, 3H)
    b_ih, b_hh = params['gru_b_ih'], params['gru_b_hh']
    w_in_b, w_hh_b, b_ih_b, b_hh_b = [], [], [], []
    for g in range(3):
        wg = W_ih_T[:, g * H:(g + 1) * H]
        w_in_b.append(jnp.concatenate([_pad2(wg[:E], Ep, Hp), _pad2(wg[E:], Hp, Hp)], axis=0))
        w_hh_b.append(_pad2(W_hh_T[:, g * H:(g + 1) * H], Hp, Hp))
        b_ih_b.append(_pad2(b_ih[g * H:(g + 1) * H][None, :], 1, Hp))
        b_hh_b.append(_pad2(b_hh[g * H:(g + 1) * H][None, :], 1, Hp))
    w_in_f = jnp.concatenate(w_in_b, axis=1).astype(mdt)           # (Kin, 3Hp)
    w_hh_f = jnp.concatenate(w_hh_b, axis=1).astype(mdt)           # (Hp, 3Hp)
    b_ih_f = jnp.concatenate(b_ih_b, axis=1).astype(f32)           # (1, 3Hp)
    b_hh_f = jnp.concatenate(b_hh_b, axis=1).astype(f32)

    # fused fc weights, rows laid out as the kernel's [x | h_new | context] slots
    W_fc_T = params['fc_W'].T                                      # (E+2H, V)
    w_fc = jnp.concatenate([_pad2(W_fc_T[:E], Ep, Vp),
                            _pad2(W_fc_T[E:E + H], Hp, Vp),
                            _pad2(W_fc_T[E + H:], Hp, Vp)], axis=0)          # (Kfc, Vp) f32
    b_fc_p = _pad2(params['fc_b'][None, :], 1, Vp).astype(f32)     # (1, Vp)

    pw = dict(mdt=mdt, E=E, H=H, V=V, Ep=Ep, Hp=Hp, tv=tv, Vp=Vp, Kin=Kin, Kfc=Kfc,
              fc_int8=bool(fc_int8),
              embedding=emb,
              enc_WT=params['enc_W'].T,
              enc_dec_b=params['enc_b'] + params['dec_b'],
              wdec_p=wdec_p, v_vpu=v_vpu,
              w_in_f=w_in_f, w_hh_f=w_hh_f, b_ih_f=b_ih_f, b_hh_f=b_hh_f,
              b_fc_p=b_fc_p)
    if fc_int8:
        amax = jnp.max(jnp.abs(w_fc), axis=0, keepdims=True)       # per output column
        scale = jnp.maximum(amax, 1e-8) / 127.0
        pw['fc_wq'] = jnp.clip(jnp.round(w_fc / scale), -127, 127).astype(jnp.int8)
        pw['fc_scale'] = scale.astype(f32)
    else:
        pw['fc_w'] = w_fc.astype(mdt)
    return pw


def prepare_encoder(pw, encoder_outputs, enc_masks, s_tile=None):
    """Per-sequence prep (run once, reused for every decode step): step-invariant encoder
    projection wh, padded encoder tensor, additive mask bias, S-tiling choice."""
    f32 = jnp.float32
    mdt, H, Hp = pw['mdt'], pw['H'], pw['Hp']
    S, B, _ = encoder_outputs.shape
    Bp = _rup(B, 8)                                   # pack batch into full sublanes
    tS = (S if S <= 256 else 256) if s_tile is None else int(s_tile)
    if tS < S:
        tS = _rup(tS, 128)                            # multi-tile blocks: lane-legal tile
    Sp = _rup(S, tS)

    enc_bsh = jnp.transpose(encoder_outputs, (1, 0, 2))            # (B, S, H)
    # step-invariant encoder projection; enc_b + dec_b folded in so the kernel tanh sees
    # a single broadcast add.
    wh = enc_bsh @ pw['enc_WT'] + pw['enc_dec_b']

    def pad3(a):
        return jnp.pad(a, ((0, Bp - B), (0, Sp - S), (0, Hp - H)))

    enc_p = pad3(enc_bsh).astype(mdt)
    wh_p = pad3(wh).astype(mdt)
    mask_bs = jnp.transpose(enc_masks, (1, 0)).astype(f32)         # (B, S)
    mask_p = jnp.pad(mask_bs, ((0, Bp - B), (0, Sp - S)))          # padded rows/cols -> 0
    mask_bias = (mask_p - 1.0) * 1e9                               # 0 valid, -1e9 masked
    return dict(B=B, Bp=Bp, S=S, Sp=Sp, tS=tS,
                enc_p=enc_p, wh_p=wh_p, mask_bias=mask_bias)


# ----------------------------- per-step forward -----------------------------

def decoder_step(pw, pe, x_ids, previous_hidden):
    """One decoder step. x_ids (1,B) int32, previous_hidden (1,B,H).
    Returns z (1,B,V), dec_final_hidden (1,B,H)."""
    f32 = jnp.float32
    mdt = pw['mdt']
    E, H, V = pw['E'], pw['H'], pw['V']
    Ep, Hp, Kin, Kfc, tv, Vp = pw['Ep'], pw['Hp'], pw['Kin'], pw['Kfc'], pw['tv'], pw['Vp']
    B, Bp, Sp, tS = pe['B'], pe['Bp'], pe['Sp'], pe['tS']
    nS = Sp // tS
    isz = mdt.itemsize

    # ---- per-step glue kept minimal: embedding gather + zero-pad of x / h ----
    x_emb = jnp.take(pw['embedding'], x_ids[0], axis=0)            # (B,E); dropout=identity (eval)
    x_p = _pad2(x_emb, Bp, Ep).astype(mdt)
    h_p = _pad2(previous_hidden[0], Bp, Hp).astype(f32)

    # ---- kernel 1: attention (online softmax over S tiles) + fused GRU step ----
    cmap2 = lambda s: (0, 0)
    in_specs1 = [
        pl.BlockSpec((Bp, Ep), cmap2),                             # x
        pl.BlockSpec((Bp, Hp), cmap2),                             # h
        pl.BlockSpec((Bp, tS, Hp), lambda s: (0, s, 0)),           # enc (streamed)
        pl.BlockSpec((Bp, tS, Hp), lambda s: (0, s, 0)),           # wh  (streamed)
        pl.BlockSpec((Bp, tS), lambda s: (0, s)),                  # mask bias (streamed)
        pl.BlockSpec((Hp, Hp), cmap2),                             # dec_W^T
        pl.BlockSpec((1, Hp), cmap2),                              # proj vector
        pl.BlockSpec((Kin, 3 * Hp), cmap2),                        # fused W_ih
        pl.BlockSpec((Hp, 3 * Hp), cmap2),                         # fused W_hh
        pl.BlockSpec((1, 3 * Hp), cmap2),                          # fused b_ih
        pl.BlockSpec((1, 3 * Hp), cmap2),                          # fused b_hh
    ]
    streamed1 = 2 * (Bp * tS * Hp * isz) + Bp * tS * 4
    resident1 = (Bp * Ep * isz + Bp * Hp * 4 + Hp * Hp * isz + Hp * 4
                 + Kin * 3 * Hp * isz + Hp * 3 * Hp * isz + 2 * 3 * Hp * 4
                 + Bp * Hp * 4 + Bp * Kfc * isz                     # outputs
                 + 2 * Bp * Hp * 4 + 2 * Bp * 4)                    # scratch
    h_new_p, fc_in = pl.pallas_call(
        functools.partial(_attn_gru_kernel, Ep=Ep, Hp=Hp,
                          ctx_mxu=(tS >= 128),
                          approx_recip=(mdt != jnp.dtype(jnp.float32))),
        out_shape=(jax.ShapeDtypeStruct((Bp, Hp), f32),
                   jax.ShapeDtypeStruct((Bp, Kfc), mdt)),
        grid=(nS,),
        in_specs=in_specs1,
        out_specs=(pl.BlockSpec((Bp, Hp), cmap2),
                   pl.BlockSpec((Bp, Kfc), cmap2)),
        scratch_shapes=[pltpu.VMEM((Bp, Hp), f32),                 # dw
                        pltpu.VMEM((Bp, 1), f32),                  # m
                        pltpu.VMEM((Bp, 1), f32),                  # l
                        pltpu.VMEM((Bp, Hp), f32)],                # ctx
        compiler_params=pltpu.CompilerParams(
            dimension_semantics=("arbitrary",),
            vmem_limit_bytes=_vmem_limit(resident1 + 2 * streamed1)),
    )(x_p, h_p, pe['enc_p'], pe['wh_p'], pe['mask_bias'],
      pw['wdec_p'], pw['v_vpu'], pw['w_in_f'], pw['w_hh_f'], pw['b_ih_f'], pw['b_hh_f'])

    # ---- kernel 2: output projection, vocab-tiled ('parallel' lane axis, lane-dense) ----
    fcin_spec = pl.BlockSpec((Bp, Kfc), lambda j: (0, 0))
    row_spec = pl.BlockSpec((1, tv), lambda j: (0, j))
    out2_spec = pl.BlockSpec((Bp, tv), lambda j: (0, j))
    if pw['fc_int8']:
        step2 = Bp * Kfc * isz + Kfc * tv * 1 + 2 * tv * 4 + Bp * tv * 4
        z_p = pl.pallas_call(
            _fc_int8_kernel,
            out_shape=jax.ShapeDtypeStruct((Bp, Vp), f32),
            grid=(Vp // tv,),
            in_specs=[fcin_spec,
                      pl.BlockSpec((Kfc, tv), lambda j: (0, j)),
                      row_spec, row_spec],
            out_specs=out2_spec,
            compiler_params=pltpu.CompilerParams(
                dimension_semantics=("parallel",),
                vmem_limit_bytes=_vmem_limit(2 * step2)),
        )(fc_in, pw['fc_wq'], pw['fc_scale'], pw['b_fc_p'])
    else:
        step2 = Bp * Kfc * isz + Kfc * tv * isz + tv * 4 + Bp * tv * 4
        z_p = pl.pallas_call(
            _fc_kernel,
            out_shape=jax.ShapeDtypeStruct((Bp, Vp), f32),
            grid=(Vp // tv,),
            in_specs=[fcin_spec,
                      pl.BlockSpec((Kfc, tv), lambda j: (0, j)),
                      row_spec],
            out_specs=out2_spec,
            compiler_params=pltpu.CompilerParams(
                dimension_semantics=("parallel",),
                vmem_limit_bytes=_vmem_limit(2 * step2)),
        )(fc_in, pw['fc_w'], pw['b_fc_p'])

    # restore PyTorch shapes: z (1, B, V), dec_final_hidden (1, B, H)
    return z_p[:B, :V][None, :, :], h_new_p[:B, :H][None, :, :]


def decoder_forward(params, x_ids, previous_hidden, encoder_outputs, enc_masks,
                    matmul_dtype=jnp.bfloat16, v_tile=1024, fc_int8=False, s_tile=None):
    """Convenience one-shot wrapper (prepares + runs a single step)."""
    pw = prepare_weights(params, matmul_dtype=matmul_dtype, v_tile=v_tile, fc_int8=fc_int8)
    pe = prepare_encoder(pw, encoder_outputs, enc_masks, s_tile=s_tile)
    return decoder_step(pw, pe, x_ids, previous_hidden)


# ----------------------------- pure-JAX reference -----------------------------

def decoder_forward_ref(params, x_ids, previous_hidden, encoder_outputs, enc_masks):
    """Pure-JAX reference mirroring the PyTorch forward (eval mode, bahdanau attention)."""
    x = params['embedding'][x_ids]                                  # (1, B, E)
    H = previous_hidden.shape[-1]
    wh = encoder_outputs @ params['enc_W'].T + params['enc_b']      # (S, B, H)
    dw = previous_hidden[-1] @ params['dec_W'].T + params['dec_b']  # (B, H)
    act = jnp.tanh(dw[None] + wh)
    energy = (act @ params['v_W'].T)[..., 0]                        # (S, B)
    scores = jnp.where(enc_masks == 0, -jnp.inf, energy)
    att = jax.nn.softmax(scores, axis=0)                            # (S, B)
    context = jnp.einsum('sb,sbh->bh', att, encoder_outputs)        # (B, H)
    dec_in = jnp.concatenate([x[0], context], axis=-1)
    gi = dec_in @ params['gru_W_ih'].T + params['gru_b_ih']
    gh = previous_hidden[-1] @ params['gru_W_hh'].T + params['gru_b_hh']
    r = jax.nn.sigmoid(gi[:, :H] + gh[:, :H])
    zg = jax.nn.sigmoid(gi[:, H:2 * H] + gh[:, H:2 * H])
    n = jnp.tanh(gi[:, 2 * H:] + r * gh[:, 2 * H:])
    h_new = (1 - zg) * n + zg * previous_hidden[-1]
    fc_in = jnp.concatenate([x[0], h_new, context], axis=-1)
    z = fc_in @ params['fc_W'].T + params['fc_b']
    return z[None], h_new[None]


# ----------------------------- test -----------------------------

if __name__ == "__main__":
    key = jax.random.PRNGKey(0)
    V = 16           # input_dim == output_dim (vocab)
    E = 16           # embedding_dim
    hidden_size = 16
    H = 2 * hidden_size   # dec_hidden_size = k * num_layers * hidden_size, k=2 (bidirectional enc)
    B, S = 2, 8

    kp, kx, kh, ke = jax.random.split(key, 4)
    params = init_params(kp, V, E, hidden_size)

    x_ids = jax.random.randint(kx, (1, B), 0, V, dtype=jnp.int32)           # one decoder step
    previous_hidden = jax.random.normal(kh, (1, B, H), dtype=jnp.float32)
    encoder_outputs = jax.random.normal(ke, (S, B, H), dtype=jnp.float32)
    lengths = jnp.array([S, 5], dtype=jnp.int32)
    enc_masks = (jnp.arange(S)[:, None] < lengths[None, :]).astype(jnp.float32)  # (S, B)

    z_ref, h_ref = decoder_forward_ref(params, x_ids, previous_hidden, encoder_outputs, enc_masks)

    # 1) f32 path: tight check of kernel structure / padding / masking correctness
    z_f32, h_f32 = decoder_forward(params, x_ids, previous_hidden, encoder_outputs, enc_masks,
                                   matmul_dtype=jnp.float32)
    jax.block_until_ready((z_f32, h_f32))
    np.testing.assert_allclose(np.asarray(z_f32), np.asarray(z_ref), rtol=2e-4, atol=2e-4)
    np.testing.assert_allclose(np.asarray(h_f32), np.asarray(h_ref), rtol=2e-4, atol=2e-4)

    # 2) fast path: bf16 matmul operands (f32 accumulate / elementwise), approx softmax recip
    z_bf, h_bf = decoder_forward(params, x_ids, previous_hidden, encoder_outputs, enc_masks,
                                 matmul_dtype=jnp.bfloat16)
    jax.block_until_ready((z_bf, h_bf))
    np.testing.assert_allclose(np.asarray(z_bf), np.asarray(z_ref), rtol=5e-2, atol=5e-2)
    np.testing.assert_allclose(np.asarray(h_bf), np.asarray(h_ref), rtol=5e-2, atol=5e-2)

    # 3) bf16 + int8-quantized fc weight stream (v5e/v6e weight-streaming optimization)
    z_q, h_q = decoder_forward(params, x_ids, previous_hidden, encoder_outputs, enc_masks,
                               matmul_dtype=jnp.bfloat16, fc_int8=True)
    jax.block_until_ready((z_q, h_q))
    np.testing.assert_allclose(np.asarray(z_q), np.asarray(z_ref), rtol=1e-1, atol=1e-1)
    np.testing.assert_allclose(np.asarray(h_q), np.asarray(h_ref), rtol=5e-2, atol=5e-2)

    # 4) multi-tile S path (online softmax over S tiles) + prepare-once jitted decode loop
    S2, steps = 256, 3
    ke2, kh2, kx2 = jax.random.split(jax.random.PRNGKey(1), 3)
    enc2 = jax.random.normal(ke2, (S2, B, H), dtype=jnp.float32)
    lengths2 = jnp.array([S2, 100], dtype=jnp.int32)
    masks2 = (jnp.arange(S2)[:, None] < lengths2[None, :]).astype(jnp.float32)
    h0 = jax.random.normal(kh2, (1, B, H), dtype=jnp.float32)
    xs = jax.random.randint(kx2, (steps, 1, B), 0, V, dtype=jnp.int32)

    pw = prepare_weights(params, matmul_dtype=jnp.float32)         # hoisted: once per model
    pe = prepare_encoder(pw, enc2, masks2, s_tile=128)             # hoisted: once per sequence
    step_fn = jax.jit(lambda x, h: decoder_step(pw, pe, x, h))     # per-step: gather+pad+2 kernels

    h_cur, h_ref_cur = h0, h0
    for t in range(steps):
        z_t, h_cur = step_fn(xs[t], h_cur)
        z_rt, h_ref_cur = decoder_forward_ref(params, xs[t], h_ref_cur, enc2, masks2)
        jax.block_until_ready((z_t, h_cur))
        np.testing.assert_allclose(np.asarray(z_t), np.asarray(z_rt), rtol=2e-3, atol=2e-3)
        np.testing.assert_allclose(np.asarray(h_cur), np.asarray(h_ref_cur), rtol=2e-3, atol=2e-3)

    print("KERNEL_OK")
</pallas_src>

<mosaic_0001>
module attributes {stable_mosaic.version = 11 : i64} {
  func.func @_attn_gru_kernel(%arg0: i32, %arg1: memref<8x128xf32, #tpu.memory_space<vmem>>, %arg2: memref<8x128xf32, #tpu.memory_space<vmem>>, %arg3: memref<8x8x128xf32, #tpu.memory_space<vmem>>, %arg4: memref<8x8x128xf32, #tpu.memory_space<vmem>>, %arg5: memref<8x8xf32, #tpu.memory_space<vmem>>, %arg6: memref<128x128xf32, #tpu.memory_space<vmem>>, %arg7: memref<1x128xf32, #tpu.memory_space<vmem>>, %arg8: memref<256x384xf32, #tpu.memory_space<vmem>>, %arg9: memref<128x384xf32, #tpu.memory_space<vmem>>, %arg10: memref<1x384xf32, #tpu.memory_space<vmem>>, %arg11: memref<1x384xf32, #tpu.memory_space<vmem>>, %arg12: memref<8x128xf32, #tpu.memory_space<vmem>>, %arg13: memref<8x384xf32, #tpu.memory_space<vmem>>, %arg14: memref<8x128xf32, #tpu.memory_space<vmem>>, %arg15: memref<8x1xf32, #tpu.memory_space<vmem>>, %arg16: memref<8x1xf32, #tpu.memory_space<vmem>>, %arg17: memref<8x128xf32, #tpu.memory_space<vmem>>) attributes {dimension_semantics = [#tpu.dimension_semantics<arbitrary>], iteration_bounds = array<i64: 1>, scalar_prefetch = 0 : i64, scratch_operands = 4 : i64, tpu.core_type = #tpu.core_type<tc>, window_params = [{pipeline_mode = #tpu.pipeline_mode<synchronous>, transform_indices = @transform_0, window_bounds = array<i64: 8, 128>}, {pipeline_mode = #tpu.pipeline_mode<synchronous>, transform_indices = @transform_1, window_bounds = array<i64: 8, 128>}, {transform_indices = @transform_2, window_bounds = array<i64: 8, 8, 128>}, {transform_indices = @transform_3, window_bounds = array<i64: 8, 8, 128>}, {transform_indices = @transform_4, window_bounds = array<i64: 8, 8>}, {pipeline_mode = #tpu.pipeline_mode<synchronous>, transform_indices = @transform_5, window_bounds = array<i64: 128, 128>}, {pipeline_mode = #tpu.pipeline_mode<synchronous>, transform_indices = @transform_6, window_bounds = array<i64: 1, 128>}, {pipeline_mode = #tpu.pipeline_mode<synchronous>, transform_indices = @transform_7, window_bounds = array<i64: 256, 384>}, {pipeline_mode = #tpu.pipeline_mode<synchronous>, transform_indices = @transform_8, window_bounds = array<i64: 128, 384>}, {pipeline_mode = #tpu.pipeline_mode<synchronous>, transform_indices = @transform_9, window_bounds = array<i64: 1, 384>}, {pipeline_mode = #tpu.pipeline_mode<synchronous>, transform_indices = @transform_10, window_bounds = array<i64: 1, 384>}, {pipeline_mode = #tpu.pipeline_mode<synchronous>, transform_indices = @transform_11, window_bounds = array<i64: 8, 128>}, {pipeline_mode = #tpu.pipeline_mode<synchronous>, transform_indices = @transform_12, window_bounds = array<i64: 8, 384>}]} {
    %c0_i32 = arith.constant 0 : i32
    %0 = arith.cmpi eq, %arg0, %c0_i32 : i32
    %1 = arith.extui %0 : i1 to i32
    %c0_i32_0 = arith.constant 0 : i32
    %2 = arith.cmpi ne, %1, %c0_i32_0 : i32
    scf.if %2 {
      %c0_29 = arith.constant 0 : index
      %c0_30 = arith.constant 0 : index
      %45 = vector.load %arg2[%c0_29, %c0_30] : memref<8x128xf32, #tpu.memory_space<vmem>>, vector<8x128xf32>
      %c0_31 = arith.constant 0 : index
      %c0_32 = arith.constant 0 : index
      %46 = vector.load %arg6[%c0_31, %c0_32] : memref<128x128xf32, #tpu.memory_space<vmem>>, vector<128x128xf32>
      %cst_33 = arith.constant dense<0.000000e+00> : vector<8x128xf32>
      %47 = tpu.matmul %45, %46, %cst_33 {dimension_numbers = #tpu.dot_dimension_numbers<[1], [0], [0], [1], [0, 0, 1, 1], [], []>} : vector<8x128xf32>, vector<128x128xf32>, vector<8x128xf32> -> vector<8x128xf32>
      %c0_34 = arith.constant 0 : index
      %c0_35 = arith.constant 0 : index
      %48 = vector.load %arg14[%c0_34, %c0_35] : memref<8x128xf32, #tpu.memory_space<vmem>>, vector<8x128xf32>
      tpu.vector_store %arg14[%c0_34, %c0_35], %47 {strides = array<i32>} : memref<8x128xf32, #tpu.memory_space<vmem>>, vector<8x128xf32>,
      %cst_36 = arith.constant 0xFF800000 : f32
      %49 = vector.broadcast %cst_36 : f32 to vector<8x1xf32>
      %c0_37 = arith.constant 0 : index
      %c0_38 = arith.constant 0 : index
      %50 = vector.load %arg15[%c0_37, %c0_38] : memref<8x1xf32, #tpu.memory_space<vmem>>, vector<8x1xf32>
      tpu.vector_store %arg15[%c0_37, %c0_38], %49 {strides = array<i32>} : memref<8x1xf32, #tpu.memory_space<vmem>>, vector<8x1xf32>,
      %cst_39 = arith.constant 0.000000e+00 : f32
      %51 = vector.broadcast %cst_39 : f32 to vector<8x1xf32>
      %c0_40 = arith.constant 0 : index
      %c0_41 = arith.constant 0 : index
      %52 = vector.load %arg16[%c0_40, %c0_41] : memref<8x1xf32, #tpu.memory_space<vmem>>, vector<8x1xf32>
      tpu.vector_store %arg16[%c0_40, %c0_41], %51 {strides = array<i32>} : memref<8x1xf32, #tpu.memory_space<vmem>>, vector<8x1xf32>,
      %cst_42 = arith.constant 0.000000e+00 : f32
      %53 = vector.broadcast %cst_42 : f32 to vector<8x128xf32>
      %c0_43 = arith.constant 0 : index
      %c0_44 = arith.constant 0 : index
      %54 = vector.load %arg17[%c0_43, %c0_44] : memref<8x128xf32, #tpu.memory_space<vmem>>, vector<8x128xf32>
      tpu.vector_store %arg17[%c0_43, %c0_44], %53 {strides = array<i32>} : memref<8x128xf32, #tpu.memory_space<vmem>>, vector<8x128xf32>,
    } else {
    }
    %c0 = arith.constant 0 : index
    %c0_1 = arith.constant 0 : index
    %3 = vector.load %arg14[%c0, %c0_1] : memref<8x128xf32, #tpu.memory_space<vmem>>, vector<8x128xf32>
    %4 = vector.shape_cast %3 : vector<8x128xf32> to vector<8x1x128xf32>
    %c0_2 = arith.constant 0 : index
    %c0_3 = arith.constant 0 : index
    %c0_4 = arith.constant 0 : index
    %5 = vector.load %arg4[%c0_2, %c0_3, %c0_4] : memref<8x8x128xf32, #tpu.memory_space<vmem>>, vector<8x8x128xf32>
    %6 = vector.broadcast %4 : vector<8x1x128xf32> to vector<8x8x128xf32>
    %7 = arith.addf %6, %5 : vector<8x8x128xf32>
    %8 = math.tanh %7 : vector<8x8x128xf32>
    %c0_5 = arith.constant 0 : index
    %c0_6 = arith.constant 0 : index
    %9 = vector.load %arg7[%c0_5, %c0_6] : memref<1x128xf32, #tpu.memory_space<vmem>>, vector<1x128xf32>
    %10 = vector.shape_cast %9 : vector<1x128xf32> to vector<1x1x128xf32>
    %11 = vector.broadcast %10 : vector<1x1x128xf32> to vector<8x8x128xf32>
    %12 = arith.mulf %8, %11 : vector<8x8x128xf32>
    %cst = arith.constant dense<0.000000e+00> : vector<8x8xf32>
    %13 = vector.multi_reduction <add>, %12, %cst [2] : vector<8x8x128xf32> to vector<8x8xf32>
    %c0_7 = arith.constant 0 : index
    %c0_8 = arith.constant 0 : index
    %14 = vector.load %arg5[%c0_7, %c0_8] : memref<8x8xf32, #tpu.memory_space<vmem>>, vector<8x8xf32>
    %15 = arith.addf %13, %14 : vector<8x8xf32>
    %c0_9 = arith.constant 0 : index
    %c0_10 = arith.constant 0 : index
    %16 = vector.load %arg15[%c0_9, %c0_10] : memref<8x1xf32, #tpu.memory_space<vmem>>, vector<8x1xf32>
    %cst_11 = arith.constant dense<0xFF800000> : vector<8xf32>
    %17 = vector.multi_reduction <maximumf>, %15, %cst_11 [1] : vector<8x8xf32> to vector<8xf32>
    %18 = vector.shape_cast %17 : vector<8xf32> to vector<8x1xf32>
    %19 = arith.maximumf %16, %18 : vector<8x1xf32>
    %20 = arith.subf %16, %19 : vector<8x1xf32>
    %21 = math.exp %20 : vector<8x1xf32>
    %22 = vector.broadcast %19 : vector<8x1xf32> to vector<8x8xf32>
    %23 = arith.subf %15, %22 : vector<8x8xf32>
    %24 = math.exp %23 : vector<8x8xf32>
    %c0_12 = arith.constant 0 : index
    %c0_13 = arith.constant 0 : index
    %25 = vector.load %arg16[%c0_12, %c0_13] : memref<8x1xf32, #tpu.memory_space<vmem>>, vector<8x1xf32>
    %26 = arith.mulf %21, %25 : vector<8x1xf32>
    %cst_14 = arith.constant dense<0.000000e+00> : vector<8xf32>
    %27 = vector.multi_reduction <add>, %24, %cst_14 [1] : vector<8x8xf32> to vector<8xf32>
    %28 = vector.shape_cast %27 : vector<8xf32> to vector<8x1xf32>
    %29 = arith.addf %26, %28 : vector<8x1xf32>
    %c0_15 = arith.constant 0 : index
    %c0_16 = arith.constant 0 : index
    %30 = vector.load %arg16[%c0_15, %c0_16] : memref<8x1xf32, #tpu.memory_space<vmem>>, vector<8x1xf32>
    tpu.vector_store %arg16[%c0_15, %c0_16], %29 {strides = array<i32>} : memref<8x1xf32, #tpu.memory_space<vmem>>, vector<8x1xf32>,
    %31 = vector.shape_cast %24 : vector<8x8xf32> to vector<8x8x1xf32>
    %c0_17 = arith.constant 0 : index
    %c0_18 = arith.constant 0 : index
    %c0_19 = arith.constant 0 : index
    %32 = vector.load %arg3[%c0_17, %c0_18, %c0_19] : memref<8x8x128xf32, #tpu.memory_space<vmem>>, vector<8x8x128xf32>
    %33 = vector.broadcast %31 : vector<8x8x1xf32> to vector<8x8x128xf32>
    %34 = arith.mulf %33, %32 : vector<8x8x128xf32>
    %cst_20 = arith.constant dense<0.000000e+00> : vector<8x128xf32>
    %35 = vector.multi_reduction <add>, %34, %cst_20 [1] : vector<8x8x128xf32> to vector<8x128xf32>
    %c0_21 = arith.constant 0 : index
    %c0_22 = arith.constant 0 : index
    %36 = vector.load %arg17[%c0_21, %c0_22] : memref<8x128xf32, #tpu.memory_space<vmem>>, vector<8x128xf32>
    %37 = vector.broadcast %21 : vector<8x1xf32> to vector<8x128xf32>
    %38 = arith.mulf %37, %36 : vector<8x128xf32>
    %39 = arith.addf %38, %35 : vector<8x128xf32>
    %c0_23 = arith.constant 0 : index
    %c0_24 = arith.constant 0 : index
    %40 = vector.load %arg17[%c0_23, %c0_24] : memref<8x128xf32, #tpu.memory_space<vmem>>, vector<8x128xf32>
    tpu.vector_store %arg17[%c0_23, %c0_24], %39 {strides = array<i32>} : memref<8x128xf32, #tpu.memory_space<vmem>>, vector<8x128xf32>,
    %c0_25 = arith.constant 0 : index
    %c0_26 = arith.constant 0 : index
    %41 = vector.load %arg15[%c0_25, %c0_26] : memref<8x1xf32, #tpu.memory_space<vmem>>, vector<8x1xf32>
    tpu.vector_store %arg15[%c0_25, %c0_26], %19 {strides = array<i32>} : memref<8x1xf32, #tpu.memory_space<vmem>>, vector<8x1xf32>,
    %c0_i32_27 = arith.constant 0 : i32
    %42 = arith.cmpi eq, %arg0, %c0_i32_27 : i32
    %43 = arith.extui %42 : i1 to i32
    %c0_i32_28 = arith.constant 0 : i32
    %44 = arith.cmpi ne, %43, %c0_i32_28 : i32
    scf.if %44 {
      %c0_29 = arith.constant 0 : index
      %c0_30 = arith.constant 0 : index
      %45 = vector.load %arg17[%c0_29, %c0_30] : memref<8x128xf32, #tpu.memory_space<vmem>>, vector<8x128xf32>
      %c0_31 = arith.constant 0 : index
      %c0_32 = arith.constant 0 : index
      %46 = vector.load %arg16[%c0_31, %c0_32] : memref<8x1xf32, #tpu.memory_space<vmem>>, vector<8x1xf32>
      %47 = tpu.reciprocal %46 : vector<8x1xf32> -> vector<8x1xf32>
      %48 = vector.broadcast %47 : vector<8x1xf32> to vector<8x128xf32>
      %49 = arith.mulf %45, %48 : vector<8x128xf32>
      %c0_33 = arith.constant 0 : index
      %c0_34 = arith.constant 0 : index
      %50 = vector.load %arg1[%c0_33, %c0_34] : memref<8x128xf32, #tpu.memory_space<vmem>>, vector<8x128xf32>
      %c0_35 = arith.constant 0 : index
      %c0_36 = arith.constant 0 : index
      %51 = vector.load %arg2[%c0_35, %c0_36] : memref<8x128xf32, #tpu.memory_space<vmem>>, vector<8x128xf32>
      %52 = tpu.concatenate %50, %49 in 1 : vector<8x128xf32>, vector<8x128xf32> -> vector<8x256xf32>
      %c0_37 = arith.constant 0 : index
      %c0_38 = arith.constant 0 : index
      %53 = vector.load %arg8[%c0_37, %c0_38] : memref<256x384xf32, #tpu.memory_space<vmem>>, vector<256x384xf32>
      %cst_39 = arith.constant dense<0.000000e+00> : vector<8x384xf32>
      %54 = tpu.matmul %52, %53, %cst_39 {dimension_numbers = #tpu.dot_dimension_numbers<[1], [0], [0], [1], [0, 0, 1, 1], [], []>} : vector<8x256xf32>, vector<256x384xf32>, vector<8x384xf32> -> vector<8x384xf32>
      %c0_40 = arith.constant 0 : index
      %c0_41 = arith.constant 0 : index
      %55 = vector.load %arg10[%c0_40, %c0_41] : memref<1x384xf32, #tpu.memory_space<vmem>>, vector<1x384xf32>
      %56 = vector.broadcast %55 : vector<1x384xf32> to vector<8x384xf32>
      %57 = arith.addf %54, %56 : vector<8x384xf32>
      %c0_42 = arith.constant 0 : index
      %c0_43 = arith.constant 0 : index
      %58 = vector.load %arg9[%c0_42, %c0_43] : memref<128x384xf32, #tpu.memory_space<vmem>>, vector<128x384xf32>
      %cst_44 = arith.constant dense<0.000000e+00> : vector<8x384xf32>
      %59 = tpu.matmul %51, %58, %cst_44 {dimension_numbers = #tpu.dot_dimension_numbers<[1], [0], [0], [1], [0, 0, 1, 1], [], []>} : vector<8x128xf32>, vector<128x384xf32>, vector<8x384xf32> -> vector<8x384xf32>
      %c0_45 = arith.constant 0 : index
      %c0_46 = arith.constant 0 : index
      %60 = vector.load %arg11[%c0_45, %c0_46] : memref<1x384xf32, #tpu.memory_space<vmem>>, vector<1x384xf32>
      %61 = vector.broadcast %60 : vector<1x384xf32> to vector<8x384xf32>
      %62 = arith.addf %59, %61 : vector<8x384xf32>
      %63 = vector.extract_strided_slice %57 {offsets = [0, 0], sizes = [8, 128], strides = [1, 1]} : vector<8x384xf32> to vector<8x128xf32>
      %64 = vector.extract_strided_slice %62 {offsets = [0, 0], sizes = [8, 128], strides = [1, 1]} : vector<8x384xf32> to vector<8x128xf32>
      %65 = arith.addf %63, %64 : vector<8x128xf32>
      %66 = arith.negf %65 : vector<8x128xf32>
      %67 = math.exp %66 : vector<8x128xf32>
      %cst_47 = arith.constant 1.000000e+00 : f32
      %68 = vector.broadcast %cst_47 : f32 to vector<8x128xf32>
      %69 = arith.addf %68, %67 : vector<8x128xf32>
      %70 = arith.divf %68, %69 : vector<8x128xf32>
      %71 = vector.extract_strided_slice %57 {offsets = [0, 128], sizes = [8, 128], strides = [1, 1]} : vector<8x384xf32> to vector<8x128xf32>
      %72 = vector.extract_strided_slice %62 {offsets = [0, 128], sizes = [8, 128], strides = [1, 1]} : vector<8x384xf32> to vector<8x128xf32>
      %73 = arith.addf %71, %72 : vector<8x128xf32>
      %74 = arith.negf %73 : vector<8x128xf32>
      %75 = math.exp %74 : vector<8x128xf32>
      %cst_48 = arith.constant 1.000000e+00 : f32
      %76 = vector.broadcast %cst_48 : f32 to vector<8x128xf32>
      %77 = arith.addf %76, %75 : vector<8x128xf32>
      %78 = arith.divf %76, %77 : vector<8x128xf32>
      %79 = vector.extract_strided_slice %57 {offsets = [0, 256], sizes = [8, 128], strides = [1, 1]} : vector<8x384xf32> to vector<8x128xf32>
      %80 = vector.extract_strided_slice %62 {offsets = [0, 256], sizes = [8, 128], strides = [1, 1]} : vector<8x384xf32> to vector<8x128xf32>
      %81 = arith.mulf %70, %80 : vector<8x128xf32>
      %82 = arith.addf %79, %81 : vector<8x128xf32>
      %83 = math.tanh %82 : vector<8x128xf32>
      %cst_49 = arith.constant 1.000000e+00 : f32
      %84 = vector.broadcast %cst_49 : f32 to vector<8x128xf32>
      %85 = arith.subf %84, %78 : vector<8x128xf32>
      %86 = arith.mulf %85, %83 : vector<8x128xf32>
      %87 = arith.mulf %78, %51 : vector<8x128xf32>
      %88 = arith.addf %86, %87 : vector<8x128xf32>
      %c0_50 = arith.constant 0 : index
      %c0_51 = arith.constant 0 : index
      %89 = vector.load %arg12[%c0_50, %c0_51] : memref<8x128xf32, #tpu.memory_space<vmem>>, vector<8x128xf32>
      tpu.vector_store %arg12[%c0_50, %c0_51], %88 {strides = array<i32>} : memref<8x128xf32, #tpu.memory_space<vmem>>, vector<8x128xf32>,
      %c0_52 = arith.constant 0 : index
      %c0_53 = arith.constant 0 : index
      %90 = vector.load %arg13[%c0_52, %c0_53] : memref<8x384xf32, #tpu.memory_space<vmem>>, vector<8x128xf32>
      tpu.vector_store %arg13[%c0_52, %c0_53], %50 {strides = array<i32>} : memref<8x384xf32, #tpu.memory_space<vmem>>, vector<8x128xf32>,
      %c0_54 = arith.constant 0 : index
      %c128 = arith.constant 128 : index
      %91 = vector.load %arg13[%c0_54, %c128] : memref<8x384xf32, #tpu.memory_space<vmem>>, vector<8x128xf32>
      tpu.vector_store %arg13[%c0_54, %c128], %88 {strides = array<i32>} : memref<8x384xf32, #tpu.memory_space<vmem>>, vector<8x128xf32>,
      %c0_55 = arith.constant 0 : index
      %c256 = arith.constant 256 : index
      %92 = vector.load %arg13[%c0_55, %c256] : memref<8x384xf32, #tpu.memory_space<vmem>>, vector<8x128xf32>
      tpu.vector_store %arg13[%c0_55, %c256], %49 {strides = array<i32>} : memref<8x384xf32, #tpu.memory_space<vmem>>, vector<8x128xf32>,
    } else {
    }
    return
  }
  func.func @transform_0(%arg0: i32) -> (i32, i32) {
    %c0_i32 = arith.constant 0 : i32
    %c0_i32_0 = arith.constant 0 : i32
    %c0_i32_1 = arith.constant 0 : i32
    return %c0_i32, %c0_i32_0 : i32, i32
  }
  func.func @transform_1(%arg0: i32) -> (i32, i32) {
    %c0_i32 = arith.constant 0 : i32
    %c0_i32_0 = arith.constant 0 : i32
    %c0_i32_1 = arith.constant 0 : i32
    return %c0_i32, %c0_i32_0 : i32, i32
  }
  func.func @transform_2(%arg0: i32) -> (i32, i32, i32) {
    %c0_i32 = arith.constant 0 : i32
    %c0_i32_0 = arith.constant 0 : i32
    %c0_i32_1 = arith.constant 0 : i32
    return %c0_i32, %arg0, %c0_i32_0 : i32, i32, i32
  }
  func.func @transform_3(%arg0: i32) -> (i32, i32, i32) {
    %c0_i32 = arith.constant 0 : i32
    %c0_i32_0 = arith.constant 0 : i32
    %c0_i32_1 = arith.constant 0 : i32
    return %c0_i32, %arg0, %c0_i32_0 : i32, i32, i32
  }
  func.func @transform_4(%arg0: i32) -> (i32, i32) {
    %c0_i32 = arith.constant 0 : i32
    %c0_i32_0 = arith.constant 0 : i32
    return %c0_i32, %arg0 : i32, i32
  }
  func.func @transform_5(%arg0: i32) -> (i32, i32) {
    %c0_i32 = arith.constant 0 : i32
    %c0_i32_0 = arith.constant 0 : i32
    %c0_i32_1 = arith.constant 0 : i32
    return %c0_i32, %c0_i32_0 : i32, i32
  }
  func.func @transform_6(%arg0: i32) -> (i32, i32) {
    %c0_i32 = arith.constant 0 : i32
    %c0_i32_0 = arith.constant 0 : i32
    %c0_i32_1 = arith.constant 0 : i32
    return %c0_i32, %c0_i32_0 : i32, i32
  }
  func.func @transform_7(%arg0: i32) -> (i32, i32) {
    %c0_i32 = arith.constant 0 : i32
    %c0_i32_0 = arith.constant 0 : i32
    %c0_i32_1 = arith.constant 0 : i32
    return %c0_i32, %c0_i32_0 : i32, i32
  }
  func.func @transform_8(%arg0: i32) -> (i32, i32) {
    %c0_i32 = arith.constant 0 : i32
    %c0_i32_0 = arith.constant 0 : i32
    %c0_i32_1 = arith.constant 0 : i32
    return %c0_i32, %c0_i32_0 : i32, i32
  }
  func.func @transform_9(%arg0: i32) -> (i32, i32) {
    %c0_i32 = arith.constant 0 : i32
    %c0_i32_0 = arith.constant 0 : i32
    %c0_i32_1 = arith.constant 0 : i32
    return %c0_i32, %c0_i32_0 : i32, i32
  }
  func.func @transform_10(%arg0: i32) -> (i32, i32) {
    %c0_i32 = arith.constant 0 : i32
    %c0_i32_0 = arith.constant 0 : i32
    %c0_i32_1 = arith.constant 0 : i32
    return %c0_i32, %c0_i32_0 : i32, i32
  }
  func.func @transform_11(%arg0: i32) -> (i32, i32) {
    %c0_i32 = arith.constant 0 : i32
    %c0_i32_0 = arith.constant 0 : i32
    %c0_i32_1 = arith.constant 0 : i32
    return %c0_i32, %c0_i32_0 : i32, i32
  }
  func.func @transform_12(%arg0: i32) -> (i32, i32) {
    %c0_i32 = arith.constant 0 : i32
    %c0_i32_0 = arith.constant 0 : i32
    %c0_i32_1 = arith.constant 0 : i32
    return %c0_i32, %c0_i32_0 : i32, i32
  }
}

</mosaic_0001>

<llo_original>
// kernel: tpu_custom_call.1
$region0: #{tpu_custom_call.1}
  #allocation0 [shape = 'u32[]', space=smem, size = 0x4, offset = 0x4, fixed_abs, tag = 'smem constant byte address 0x4 - core index']
  #allocation1 [shape = 'u32[144,128]{1,0:T(1,128)}', space=vmem, size = 0x12000, scoped, tag = 'internal scratch']
  #allocation2 [shape = 'f32[8,128]{1,0:T(8,128)}', space=vmem, size = 0x1000, scoped, tag = 'scratch operand']
  #allocation3 [shape = 'f32[8,1]{1,0:T(8,128)}', space=vmem, size = 0x1000, scoped, tag = 'scratch operand']
  #allocation4 [shape = 'f32[8,1]{1,0:T(8,128)}', space=vmem, size = 0x1000, scoped, tag = 'scratch operand']
  #allocation5 [shape = 'f32[8,128]{1,0:T(8,128)}', space=vmem, size = 0x1000, scoped, tag = 'scratch operand']
  %s0 = inlined_call_operand.hbm [shape: f32[8,128], index: 0, kind: input, shape index: {}]
  %s1 = inlined_call_operand.hbm [shape: f32[8,128], index: 1, kind: input, shape index: {}]
  %s2 = inlined_call_operand.hbm [shape: f32[8,8,128], index: 2, kind: input, shape index: {}]
  %s3 = inlined_call_operand.hbm [shape: f32[8,8,128], index: 3, kind: input, shape index: {}]
  %s4 = inlined_call_operand.vmem [shape: f32[8,8], index: 4, kind: input, shape index: {}]
  %s5 = inlined_call_operand.hbm [shape: f32[128,128], index: 5, kind: input, shape index: {}]
  %s6 = inlined_call_operand.vmem [shape: f32[1,128], index: 6, kind: input, shape index: {}]
  %s7 = inlined_call_operand.hbm [shape: f32[256,384], index: 7, kind: input, shape index: {}]
  %s8 = inlined_call_operand.hbm [shape: f32[128,384], index: 8, kind: input, shape index: {}]
  %s9 = inlined_call_operand.vmem [shape: f32[1,384], index: 9, kind: input, shape index: {}]
  %s10 = inlined_call_operand.vmem [shape: f32[1,384], index: 10, kind: input, shape index: {}]
  %s11 = inlined_call_operand.hbm [shape: f32[8,128], index: 11, kind: output, shape index: {0}]
  %s12 = inlined_call_operand.hbm [shape: f32[8,384], index: 12, kind: output, shape index: {1}]
  %13 = xla_tuple %s11, %s12
  %s14 = sld [smem:[#allocation0]]
  $region98: #{tpu_custom_call.1} parent=0
    _
  %s16 = ssub.s32 1, %s14
  %s17 = scalar_select 0, %s16, %s14
  $region1: #{tpu_custom_call.1} parent=0
    #allocation6 [shape = 'u8[4096]{0}', space=vmem, size = 0x1000, scoped, tag = 'input window, operand 0, single buffered']
    #allocation7 [shape = 's32[1]{0}', space=sflag, size = 0x4, scoped, tag = 'scoped memory for tpu_custom_call.1']
    #allocation8 [shape = 's32[1]{0}', space=sflag, size = 0x4, scoped, tag = 'scoped memory for tpu_custom_call.1']
    #allocation9 [shape = 'u8[4096]{0}', space=vmem, size = 0x1000, scoped, tag = 'input window, operand 1, single buffered']
    #allocation10 [shape = 's32[1]{0}', space=sflag, size = 0x4, scoped, tag = 'scoped memory for tpu_custom_call.1']
    #allocation11 [shape = 'u8[32768]{0}', space=vmem, size = 0x8000, scoped, tag = 'input window, operand 2, single buffered']
    #allocation12 [shape = 'u8[32768]{0}', space=vmem, size = 0x8000, scoped, tag = 'input window, operand 3, single buffered']
    #allocation13 [shape = 's32[1]{0}', space=sflag, size = 0x4, scoped, tag = 'scoped memory for tpu_custom_call.1']
    #allocation14 [shape = 'u8[65536]{0}', space=vmem, size = 0x10000, scoped, tag = 'input window, operand 5, single buffered']
    #allocation15 [shape = 'u8[393216]{0}', space=vmem, size = 0x60000, scoped, tag = 'input window, operand 7, single buffered']
    #allocation16 [shape = 's32[1]{0}', space=sflag, size = 0x4, scoped, tag = 'scoped memory for tpu_custom_call.1']
    #allocation17 [shape = 'u8[196608]{0}', space=vmem, size = 0x30000, scoped, tag = 'input window, operand 8, single buffered']
    #allocation18 [shape = 'u8[4096]{0}', space=vmem, size = 0x1000, scoped, tag = 'output window, operand 0, single buffered']
    #allocation19 [shape = 'u8[12288]{0}', space=vmem, size = 0x3000, scoped, tag = 'output window, operand 1, single buffered']
    #allocation20 [shape = 's32[1]{0}', space=sflag, size = 0x4, scoped, tag = 'scoped memory for tpu_custom_call.1']
    %18 = vsyncpa [#allocation7], 0
    %19 = vsyncpa [#allocation10], 0
    %20 = vsyncpa [#allocation13], 0
    %21 = vsyncpa [#allocation16], 0
    %22 = vsyncpa [#allocation8], 0
    %23 = vsyncpa [#allocation20], 0
    // Predicated region
    $region2: #{tpu_custom_call.1} parent=1 // pred_check
      _
    $region3: #{tpu_custom_call.1} parent=1 // pred_check_branch
      %25 = sbr.rel (0) target = $region5
    $region4: #{tpu_custom_call.1} parent=1 // pred_region
      %s27 = ssub.s32 128, 128
      %28 = vsyncadd [#allocation7], %s27
      %s30 = sshll.u32 [#allocation6], 4
      %s31 = int_to_ptr.vmem [resolvable:$true] %s30
      %33 = dma.hbm_to_vmem [thread:$0]  %s0, 128, %s31, [#allocation7]
    $region5: #{tpu_custom_call.1} parent=1 // pred_fallthru
      _
    // Predicated region
    $region6: #{tpu_custom_call.1} parent=1 // pred_check
      _
    $region7: #{tpu_custom_call.1} parent=1 // pred_check_branch
      %35 = sbr.rel (0) target = $region9
    $region8: #{tpu_custom_call.1} parent=1 // pred_region
      %s37 = ssub.s32 128, 128
      %38 = vsyncadd [#allocation10], %s37
      %s40 = sshll.u32 [#allocation9], 4
      %s41 = int_to_ptr.vmem [resolvable:$true] %s40
      %43 = dma.hbm_to_vmem [thread:$0]  %s1, 128, %s41, [#allocation10]
    $region9: #{tpu_custom_call.1} parent=1 // pred_fallthru
      _
    // Predicated region
    $region10: #{tpu_custom_call.1} parent=1 // pred_check
      _
    $region11: #{tpu_custom_call.1} parent=1 // pred_check_branch
      %45 = sbr.rel (0) target = $region13
    $region12: #{tpu_custom_call.1} parent=1 // pred_region
      %s47 = ssub.s32 1024, 1024
      %48 = vsyncadd [#allocation10], %s47
      %s49 = sshll.u32 [#allocation11], 4
      %s50 = int_to_ptr.vmem [resolvable:$true] %s49
      %55 = dma.hbm_to_vmem [thread:$0]  %s2, 1024, %s50, [#allocation10], 128, 128, 8
    $region13: #{tpu_custom_call.1} parent=1 // pred_fallthru
      _
    // Predicated region
    $region14: #{tpu_custom_call.1} parent=1 // pred_check
      _
    $region15: #{tpu_custom_call.1} parent=1 // pred_check_branch
      %57 = sbr.rel (0) target = $region17
    $region16: #{tpu_custom_call.1} parent=1 // pred_region
      %s59 = ssub.s32 1024, 1024
      %60 = vsyncadd [#allocation13], %s59
      %s61 = sshll.u32 [#allocation12], 4
      %s62 = int_to_ptr.vmem [resolvable:$true] %s61
      %67 = dma.hbm_to_vmem [thread:$0]  %s3, 1024, %s62, [#allocation13], 128, 128, 8
    $region17: #{tpu_custom_call.1} parent=1 // pred_fallthru
      _
    // Predicated region
    $region18: #{tpu_custom_call.1} parent=1 // pred_check
      _
    $region19: #{tpu_custom_call.1} parent=1 // pred_check_branch
      %69 = sbr.rel (0) target = $region21
    $region20: #{tpu_custom_call.1} parent=1 // pred_region
      _
    $region21: #{tpu_custom_call.1} parent=1 // pred_fallthru
      _
    // Predicated region
    $region22: #{tpu_custom_call.1} parent=1 // pred_check
      _
    $region23: #{tpu_custom_call.1} parent=1 // pred_check_branch
      %71 = sbr.rel (0) target = $region25
    $region24: #{tpu_custom_call.1} parent=1 // pred_region
      %s73 = ssub.s32 2048, 2048
      %74 = vsyncadd [#allocation13], %s73
      %s75 = sshll.u32 [#allocation14], 4
      %s76 = int_to_ptr.vmem [resolvable:$true] %s75
      %81 = dma.hbm_to_vmem [thread:$0]  %s5, 2048, %s76, [#allocation13], 128, 128, 8
    $region25: #{tpu_custom_call.1} parent=1 // pred_fallthru
      _
    // Predicated region
    $region26: #{tpu_custom_call.1} parent=1 // pred_check
      _
    $region27: #{tpu_custom_call.1} parent=1 // pred_check_branch
      %83 = sbr.rel (0) target = $region29
    $region28: #{tpu_custom_call.1} parent=1 // pred_region
      _
    $region29: #{tpu_custom_call.1} parent=1 // pred_fallthru
      _
    // Predicated region
    $region30: #{tpu_custom_call.1} parent=1 // pred_check
      _
    $region31: #{tpu_custom_call.1} parent=1 // pred_check_branch
      %85 = sbr.rel (0) target = $region33
    $region32: #{tpu_custom_call.1} parent=1 // pred_region
      %s87 = ssub.s32 12288, 12288
      %88 = vsyncadd [#allocation16], %s87
      %s89 = sshll.u32 [#allocation15], 4
      %s90 = int_to_ptr.vmem [resolvable:$true] %s89
      %95 = dma.hbm_to_vmem [thread:$0]  %s7, 12288, %s90, [#allocation16], 384, 384, 24
    $region33: #{tpu_custom_call.1} parent=1 // pred_fallthru
      _
    // Predicated region
    $region34: #{tpu_custom_call.1} parent=1 // pred_check
      _
    $region35: #{tpu_custom_call.1} parent=1 // pred_check_branch
      %97 = sbr.rel (0) target = $region37
    $region36: #{tpu_custom_call.1} parent=1 // pred_region
      %s99 = ssub.s32 6144, 6144
      %100 = vsyncadd [#allocation16], %s99
      %s101 = sshll.u32 [#allocation17], 4
      %s102 = int_to_ptr.vmem [resolvable:$true] %s101
      %107 = dma.hbm_to_vmem [thread:$0]  %s8, 6144, %s102, [#allocation16], 384, 384, 24
    $region37: #{tpu_custom_call.1} parent=1 // pred_fallthru
      _
    // Predicated region
    $region38: #{tpu_custom_call.1} parent=1 // pred_check
      _
    $region39: #{tpu_custom_call.1} parent=1 // pred_check_branch
      %109 = sbr.rel (0) target = $region41
    $region40: #{tpu_custom_call.1} parent=1 // pred_region
      _
    $region41: #{tpu_custom_call.1} parent=1 // pred_fallthru
      _
    // Predicated region
    $region42: #{tpu_custom_call.1} parent=1 // pred_check
      _
    $region43: #{tpu_custom_call.1} parent=1 // pred_check_branch
      %111 = sbr.rel (0) target = $region45
    $region44: #{tpu_custom_call.1} parent=1 // pred_region
      _
    $region45: #{tpu_custom_call.1} parent=1 // pred_fallthru
      _
    // Predicated region
    $region46: #{tpu_custom_call.1} parent=1 // pred_check
      _
    $region47: #{tpu_custom_call.1} parent=1 // pred_check_branch
      %113 = sbr.rel (0) target = $region49
    $region48: #{tpu_custom_call.1} parent=1 // pred_region
      %114 = dma.done [#allocation7], 128
    $region49: #{tpu_custom_call.1} parent=1 // pred_fallthru
      _
    // Predicated region
    $region50: #{tpu_custom_call.1} parent=1 // pred_check
      _
    $region51: #{tpu_custom_call.1} parent=1 // pred_check_branch
      %116 = sbr.rel (0) target = $region53
    $region52: #{tpu_custom_call.1} parent=1 // pred_region
      %117 = dma.done [#allocation10], 128
    $region53: #{tpu_custom_call.1} parent=1 // pred_fallthru
      _
    // Predicated region
    $region54: #{tpu_custom_call.1} parent=1 // pred_check
      _
    $region55: #{tpu_custom_call.1} parent=1 // pred_check_branch
      %119 = sbr.rel (0) target = $region57
    $region56: #{tpu_custom_call.1} parent=1 // pred_region
      %120 = dma.done [#allocation10], 1024
    $region57: #{tpu_custom_call.1} parent=1 // pred_fallthru
      _
    // Predicated region
    $region58: #{tpu_custom_call.1} parent=1 // pred_check
      _
    $region59: #{tpu_custom_call.1} parent=1 // pred_check_branch
      %122 = sbr.rel (0) target = $region61
    $region60: #{tpu_custom_call.1} parent=1 // pred_region
      %123 = dma.done [#allocation13], 1024
    $region61: #{tpu_custom_call.1} parent=1 // pred_fallthru
      _
    // Predicated region
    $region62: #{tpu_custom_call.1} parent=1 // pred_check
      _
    $region63: #{tpu_custom_call.1} parent=1 // pred_check_branch
      %125 = sbr.rel (0) target = $region65
    $region64: #{tpu_custom_call.1} parent=1 // pred_region
      %126 = dma.done [#allocation13], 2048
    $region65: #{tpu_custom_call.1} parent=1 // pred_fallthru
      _
    // Predicated region
    $region66: #{tpu_custom_call.1} parent=1 // pred_check
      _
    $region67: #{tpu_custom_call.1} parent=1 // pred_check_branch
      %128 = sbr.rel (0) target = $region69
    $region68: #{tpu_custom_call.1} parent=1 // pred_region
      %129 = dma.done [#allocation16], 12288
    $region69: #{tpu_custom_call.1} parent=1 // pred_fallthru
      _
    // Predicated region
    $region70: #{tpu_custom_call.1} parent=1 // pred_check
      _
    $region71: #{tpu_custom_call.1} parent=1 // pred_check_branch
      %131 = sbr.rel (0) target = $region73
    $region72: #{tpu_custom_call.1} parent=1 // pred_region
      %132 = dma.done [#allocation16], 6144
    $region73: #{tpu_custom_call.1} parent=1 // pred_fallthru
      _
    %p133 = scmp.eq.s32.totalorder 0, 0
    // Predicated region
    $region74: #{tpu_custom_call.1} parent=1 // pred_check
      %p134 = pneg %p133
    $region75: #{tpu_custom_call.1} parent=1 // pred_check_branch
      %136 = sbr.rel (%p134) target = $region77
    $region76: #{tpu_custom_call.1} parent=1 // pred_region
      %v137 = vld [vmem:[#allocation9] sm:$0xff]
      %v138 = vld [vmem:[#allocation14] sm:$0xff]
      %v139 = vld [vmem:[#allocation14 + $0x8] sm:$0xff]
      %v140 = vld [vmem:[#allocation14 + $0x10] sm:$0xff]
      %v141 = vld [vmem:[#allocation14 + $0x18] sm:$0xff]
      %v142 = vld [vmem:[#allocation14 + $0x20] sm:$0xff]
      %v143 = vld [vmem:[#allocation14 + $0x28] sm:$0xff]
      %v144 = vld [vmem:[#allocation14 + $0x30] sm:$0xff]
      %v145 = vld [vmem:[#allocation14 + $0x38] sm:$0xff]
      %v146 = vld [vmem:[#allocation14 + $0x40] sm:$0xff]
      %v147 = vld [vmem:[#allocation14 + $0x48] sm:$0xff]
      %v148 = vld [vmem:[#allocation14 + $0x50] sm:$0xff]
      %v149 = vld [vmem:[#allocation14 + $0x58] sm:$0xff]
      %v150 = vld [vmem:[#allocation14 + $0x60] sm:$0xff]
      %v151 = vld [vmem:[#allocation14 + $0x68] sm:$0xff]
      %v152 = vld [vmem:[#allocation14 + $0x70] sm:$0xff]
      %v153 = vld [vmem:[#allocation14 + $0x78] sm:$0xff]
      %154 = vmatprep.subr.mxu0 0.0
      %155 = vmatpush1.msra.mxu0 %v138
      %156 = vmatprep.subr.mxu0 0.0
      %157 = vmatpush1.msra.mxu0 %v139
      %158 = vmatprep.subr.mxu0 0.0
      %159 = vmatpush1.msra.mxu0 %v140
      %160 = vmatprep.subr.mxu0 0.0
      %161 = vmatpush1.msra.mxu0 %v141
      %162 = vmatprep.subr.mxu0 0.0
      %163 = vmatpush1.msra.mxu0 %v142
      %164 = vmatprep.subr.mxu0 0.0
      %165 = vmatpush1.msra.mxu0 %v143
      %166 = vmatprep.subr.mxu0 0.0
      %167 = vmatpush1.msra.mxu0 %v144
      %168 = vmatprep.subr.mxu0 0.0
      %169 = vmatpush1.msra.mxu0 %v145
      %170 = vmatprep.subr.mxu0 0.0
      %171 = vmatpush1.msra.mxu0 %v146
      %172 = vmatprep.subr.mxu0 0.0
      %173 = vmatpush1.msra.mxu0 %v147
      %174 = vmatprep.subr.mxu0 0.0
      %175 = vmatpush1.msra.mxu0 %v148
      %176 = vmatprep.subr.mxu0 0.0
      %177 = vmatpush1.msra.mxu0 %v149
      %178 = vmatprep.subr.mxu0 0.0
      %179 = vmatpush1.msra.mxu0 %v150
      %180 = vmatprep.subr.mxu0 0.0
      %181 = vmatpush1.msra.mxu0 %v151
      %182 = vmatprep.subr.mxu0 0.0
      %183 = vmatpush1.msra.mxu0 %v152
      %184 = vmatprep.subr.mxu0 0.0
      %185 = vmatpush1.msra.mxu0 %v153
      %186 = vmatprep.subr.mxu0 0.0
      %187 = vmatpush1.msra.mxu0 0.0
      %188 = vmatprep.subr.mxu0 0.0
      %189 = vmatpush1.msra.mxu0 0.0
      %190 = vmatprep.subr.mxu0 0.0
      %191 = vmatpush1.msra.mxu0 0.0
      %192 = vmatprep.subr.mxu0 0.0
      %193 = vmatpush1.msra.mxu0 0.0
      %194 = vmatprep.subr.mxu0 0.0
      %195 = vmatpush1.msra.mxu0 0.0
      %196 = vmatprep.subr.mxu0 0.0
      %197 = vmatpush1.msra.mxu0 0.0
      %198 = vmatprep.subr.mxu0 0.0
      %199 = vmatpush1.msra.mxu0 0.0
      %200 = vmatprep.subr.mxu0 0.0
      %201 = vmatpush1.msra.mxu0 0.0
      %202 = vmatprep.subr.mxu0 0.0
      %203 = vmatpush1.msra.mxu0 0.0
      %204 = vmatprep.subr.mxu0 0.0
      %205 = vmatpush1.msra.mxu0 0.0
      %206 = vmatprep.subr.mxu0 0.0
      %207 = vmatpush1.msra.mxu0 0.0
      %208 = vmatprep.subr.mxu0 0.0
      %209 = vmatpush1.msra.mxu0 0.0
      %210 = vmatprep.subr.mxu0 0.0
      %211 = vmatpush1.msra.mxu0 0.0
      %212 = vmatprep.subr.mxu0 0.0
      %213 = vmatpush1.msra.mxu0 0.0
      %214 = vmatprep.subr.mxu0 0.0
      %215 = vmatpush1.msra.mxu0 0.0
      %216 = vmatprep.subr.mxu0 0.0
      %217 = vmatpush1.msra.mxu0 0.0
      %218 = vmatprep.mubr.f32.mxu0 0.0
      %219 = vmatmul.mubr.f32.gmra.mrb[0].mxu0 %v137
      %v220 = vpop.f32.mrb[0].mxu0
      %v221 = vadd.f32 0.0, %v220
      %v222 = vpop.f32.mrb[0].mxu0
      %223 = vdwg.mxu0
      %224 = vst [vmem:[#allocation2] sm:$0xff] %v221
      %vm225 = vcmask 7168
      %226 = vst.msk [vmem:[#allocation3] sm:$0xff] %vm225, -inf
      %227 = vst.msk [vmem:[#allocation4] sm:$0xff] %vm225, 0.0
      %228 = vst [vmem:[#allocation5] sm:$0xff] 0.0
    $region77: #{tpu_custom_call.1} parent=1 // pred_fallthru
      _
    %v229 = vld [vmem:[#allocation2] sm:$0xff]
    %v231 = vcombine.high %v229, %v229
    %v233 = vunpack.c.l.s4 1966171168
    %v234 = vunpack.c.0.s8 %v233
    %v235 = vlaneseq
    %v236 = vshrl.u32 %v235, 7
    %v237 = vsub.s32 %v234, %v236
    %v238 = vrot.slane %v229, %v237
    %v240 = vunpack.c.l.s4 1966171168
    %v241 = vunpack.c.0.s8 %v240
    %v242 = vlaneseq
    %v243 = vshrl.u32 %v242, 7
    %v244 = vsub.s32 %v241, %v243
    %v245 = vrot.slane %v231, %v244
    %v246 = vcombine.high %v238, %v238
    %v247 = vcombine.high %v245, %v245
    %v249 = vunpack.c.l.s4 1966171168
    %v250 = vunpack.c.0.s8 %v249
    %v251 = vlaneseq
    %v252 = vshrl.u32 %v251, 7
    %v253 = vsub.s32 %v250, %v252
    %v254 = vrot.slane %v238, %v253
    %v256 = vunpack.c.l.s4 1966171168
    %v257 = vunpack.c.0.s8 %v256
    %v258 = vlaneseq
    %v259 = vshrl.u32 %v258, 7
    %v260 = vsub.s32 %v257, %v259
    %v261 = vrot.slane %v245, %v260
    %v263 = vunpack.c.l.s4 1966171168
    %v264 = vunpack.c.0.s8 %v263
    %v265 = vlaneseq
    %v266 = vshrl.u32 %v265, 7
    %v267 = vsub.s32 %v264, %v266
    %v268 = vrot.slane %v246, %v267
    %v270 = vunpack.c.l.s4 1966171168
    %v271 = vunpack.c.0.s8 %v270
    %v272 = vlaneseq
    %v273 = vshrl.u32 %v272, 7
    %v274 = vsub.s32 %v271, %v273
    %v275 = vrot.slane %v247, %v274
    %v276 = vcombine.high %v254, %v254
    %v277 = vcombine.high %v261, %v261
    %v278 = vcombine.high %v268, %v268
    %v279 = vcombine.high %v275, %v275
    %v280 = vld [vmem:[#allocation12] sm:$0xff]
    %v281 = vld [vmem:[#allocation12 + $0x8] sm:$0xff]
    %v282 = vld [vmem:[#allocation12 + $0x10] sm:$0xff]
    %v283 = vld [vmem:[#allocation12 + $0x18] sm:$0xff]
    %v284 = vld [vmem:[#allocation12 + $0x20] sm:$0xff]
    %v285 = vld [vmem:[#allocation12 + $0x28] sm:$0xff]
    %v286 = vld [vmem:[#allocation12 + $0x30] sm:$0xff]
    %v287 = vld [vmem:[#allocation12 + $0x38] sm:$0xff]
    %v288 = vlaneseq
    %v289 = vshrl.u32 %v288, 7
    %v290 = vsub.s32 0, %v289
    %v291 = vrot.slane %v254, %v290
    %v292 = vlaneseq
    %v293 = vshrl.u32 %v292, 7
    %v294 = vsub.s32 0, %v293
    %v295 = vrot.slane %v268, %v294
    %v296 = vlaneseq
    %v297 = vshrl.u32 %v296, 7
    %v298 = vsub.s32 0, %v297
    %v299 = vrot.slane %v276, %v298
    %v300 = vlaneseq
    %v301 = vshrl.u32 %v300, 7
    %v302 = vsub.s32 0, %v301
    %v303 = vrot.slane %v278, %v302
    %v304 = vlaneseq
    %v305 = vshrl.u32 %v304, 7
    %v306 = vsub.s32 0, %v305
    %v307 = vrot.slane %v261, %v306
    %v308 = vlaneseq
    %v309 = vshrl.u32 %v308, 7
    %v310 = vsub.s32 0, %v309
    %v311 = vrot.slane %v275, %v310
    %v312 = vlaneseq
    %v313 = vshrl.u32 %v312, 7
    %v314 = vsub.s32 0, %v313
    %v315 = vrot.slane %v277, %v314
    %v316 = vlaneseq
    %v317 = vshrl.u32 %v316, 7
    %v318 = vsub.s32 0, %v317
    %v319 = vrot.slane %v279, %v318
    %v328 = vadd.f32 %v291, %v280
    %v329 = vadd.f32 %v295, %v281
    %v330 = vadd.f32 %v299, %v282
    %v331 = vadd.f32 %v303, %v283
    %v332 = vadd.f32 %v307, %v284
    %v333 = vadd.f32 %v311, %v285
    %v334 = vadd.f32 %v315, %v286
    %v335 = vadd.f32 %v319, %v287
    %v336 = vtanh.pop %v328
    %v337 = vtanh.pop %v329
    %v338 = vtanh.pop %v330
    %v339 = vtanh.pop %v331
    %v340 = vtanh.pop %v332
    %v341 = vtanh.pop %v333
    %v342 = vtanh.pop %v334
    %v343 = vtanh.pop %v335
    %v344 = vld [vmem:[%s6] sm:$0x1]
    %v346 = vlaneseq
    %v347 = vshrl.u32 %v346, 7
    %v348 = vsub.s32 0, %v347
    %v349 = vrot.slane %v344, %v348
    %v351 = vmul.f32 %v336, %v349
    %v352 = vmul.f32 %v337, %v349
    %v353 = vmul.f32 %v338, %v349
    %v354 = vmul.f32 %v339, %v349
    %v355 = vmul.f32 %v340, %v349
    %v356 = vmul.f32 %v341, %v349
    %v357 = vmul.f32 %v342, %v349
    %v358 = vmul.f32 %v343, %v349
    %359 = vadd.xlane.f32.xlu0 %v351
    %v360 = vpop.xlane.xlu0 %359
    %361 = vadd.xlane.f32.xlu0 %v352
    %v362 = vpop.xlane.xlu0 %361
    %363 = vadd.xlane.f32.xlu0 %v353
    %v364 = vpop.xlane.xlu0 %363
    %365 = vadd.xlane.f32.xlu0 %v354
    %v366 = vpop.xlane.xlu0 %365
    %367 = vadd.xlane.f32.xlu0 %v355
    %v368 = vpop.xlane.xlu0 %367
    %369 = vadd.xlane.f32.xlu0 %v356
    %v370 = vpop.xlane.xlu0 %369
    %371 = vadd.xlane.f32.xlu0 %v357
    %v372 = vpop.xlane.xlu0 %371
    %373 = vadd.xlane.f32.xlu0 %v358
    %v374 = vpop.xlane.xlu0 %373
    %v375 = vld [vmem:[%s4] sm:$0xff]
    %v377 = vlaneseq
    %v378 = vshrl.u32 %v377, 7
    %v379 = vsub.s32 0, %v378
    %v380 = vrot.slane %v375, %v379
    %382 = vbcast.lane.b32.xlu0 %v380, 256
    %v383 = vpop.permute.xlu0 %382
    %v384 = vlaneseq
    %v385 = vshrl.u32 %v384, 7
    %v386 = vsub.s32 1, %v385
    %v387 = vrot.slane %v375, %v386
    %389 = vbcast.lane.b32.xlu0 %v387, 256
    %v390 = vpop.permute.xlu0 %389
    %v391 = vlaneseq
    %v392 = vshrl.u32 %v391, 7
    %v393 = vsub.s32 2, %v392
    %v394 = vrot.slane %v375, %v393
    %396 = vbcast.lane.b32.xlu0 %v394, 256
    %v397 = vpop.permute.xlu0 %396
    %v398 = vlaneseq
    %v399 = vshrl.u32 %v398, 7
    %v400 = vsub.s32 3, %v399
    %v401 = vrot.slane %v375, %v400
    %403 = vbcast.lane.b32.xlu0 %v401, 256
    %v404 = vpop.permute.xlu0 %403
    %v405 = vlaneseq
    %v406 = vshrl.u32 %v405, 7
    %v407 = vsub.s32 4, %v406
    %v408 = vrot.slane %v375, %v407
    %410 = vbcast.lane.b32.xlu0 %v408, 256
    %v411 = vpop.permute.xlu0 %410
    %v412 = vlaneseq
    %v413 = vshrl.u32 %v412, 7
    %v414 = vsub.s32 5, %v413
    %v415 = vrot.slane %v375, %v414
    %417 = vbcast.lane.b32.xlu0 %v415, 256
    %v418 = vpop.permute.xlu0 %417
    %v419 = vlaneseq
    %v420 = vshrl.u32 %v419, 7
    %v421 = vsub.s32 6, %v420
    %v422 = vrot.slane %v375, %v421
    %424 = vbcast.lane.b32.xlu0 %v422, 256
    %v425 = vpop.permute.xlu0 %424
    %v426 = vlaneseq
    %v427 = vshrl.u32 %v426, 7
    %v428 = vsub.s32 7, %v427
    %v429 = vrot.slane %v375, %v428
    %431 = vbcast.lane.b32.xlu0 %v429, 256
    %v432 = vpop.permute.xlu0 %431
    %v441 = vadd.f32 %v360, %v383
    %v442 = vadd.f32 %v362, %v390
    %v443 = vadd.f32 %v364, %v397
    %v444 = vadd.f32 %v366, %v404
    %v445 = vadd.f32 %v368, %v411
    %v446 = vadd.f32 %v370, %v418
    %v447 = vadd.f32 %v372, %v425
    %v448 = vadd.f32 %v374, %v432
    %v449 = vld [vmem:[#allocation3] sm:$0xff]
    %458 = vset.pattern.permute.xlu0 0
    %459 = vperm.xlu0 %458, %v441
    %v460 = vpop.permute.xlu0 %459
    %461 = vset.pattern.permute.xlu0 0
    %462 = vperm.xlu0 %461, %v442
    %v463 = vpop.permute.xlu0 %462
    %464 = vset.pattern.permute.xlu0 0
    %465 = vperm.xlu0 %464, %v443
    %v466 = vpop.permute.xlu0 %465
    %467 = vset.pattern.permute.xlu0 0
    %468 = vperm.xlu0 %467, %v444
    %v469 = vpop.permute.xlu0 %468
    %470 = vset.pattern.permute.xlu0 0
    %471 = vperm.xlu0 %470, %v445
    %v472 = vpop.permute.xlu0 %471
    %473 = vset.pattern.permute.xlu0 0
    %474 = vperm.xlu0 %473, %v446
    %v475 = vpop.permute.xlu0 %474
    %476 = vset.pattern.permute.xlu0 0
    %477 = vperm.xlu0 %476, %v447
    %v478 = vpop.permute.xlu0 %477
    %479 = vset.pattern.permute.xlu0 0
    %480 = vperm.xlu0 %479, %v448
    %v481 = vpop.permute.xlu0 %480
    %v482 = vlaneseq
    %v483 = vand.u32 %v482, 127
    %v484 = vlaneseq
    %v485 = vshrl.u32 %v484, 7
    %v486 = vsub.s32 %v483, %v485
    %v487 = vrot.slane %v460, %v486
    %v488 = vlaneseq
    %v489 = vshrl.u32 %v488, 7
    %v490 = vsub.s32 %v483, %v489
    %v491 = vrot.slane %v463, %v490
    %v492 = vlaneseq
    %v493 = vshrl.u32 %v492, 7
    %v494 = vsub.s32 %v483, %v493
    %v495 = vrot.slane %v466, %v494
    %v496 = vlaneseq
    %v497 = vshrl.u32 %v496, 7
    %v498 = vsub.s32 %v483, %v497
    %v499 = vrot.slane %v469, %v498
    %v500 = vlaneseq
    %v501 = vshrl.u32 %v500, 7
    %v502 = vsub.s32 %v483, %v501
    %v503 = vrot.slane %v472, %v502
    %v504 = vlaneseq
    %v505 = vshrl.u32 %v504, 7
    %v506 = vsub.s32 %v483, %v505
    %v507 = vrot.slane %v475, %v506
    %v508 = vlaneseq
    %v509 = vshrl.u32 %v508, 7
    %v510 = vsub.s32 %v483, %v509
    %v511 = vrot.slane %v478, %v510
    %v512 = vlaneseq
    %v513 = vshrl.u32 %v512, 7
    %v514 = vsub.s32 %v483, %v513
    %v515 = vrot.slane %v481, %v514
    %vm516 = vcmask 1041409
    %v517 = vsel %vm516, %v491, %v487
    %vm518 = vcmask 1042434
    %v519 = vsel %vm518, %v495, %v517
    %vm520 = vcmask 1043459
    %v521 = vsel %vm520, %v499, %v519
    %vm522 = vcmask 1044484
    %v523 = vsel %vm522, %v503, %v521
    %vm524 = vcmask 1045509
    %v525 = vsel %vm524, %v507, %v523
    %vm526 = vcmask 1046534
    %v527 = vsel %vm526, %v511, %v525
    %vm528 = vcmask 1047559
    %v529 = vsel %vm528, %v515, %v527
    %vm531 = vcmask 64512
    %v532 = vsel %vm531, %v529, -inf
    %533 = vmax.xlane.f32.xlu0 %v532
    %v534 = vpop.xlane.xlu0 %533
    %v535 = vmax.f32 %v449, %v534
    %v536 = vsub.f32 %v449, %v535
    %v537 = vmul.f32 %v536, 1.442695
    %v538 = vpow.pop %v537
    %540 = vset.pattern.permute.xlu0 0
    %541 = vperm.xlu0 %540, %v535
    %v542 = vpop.permute.xlu0 %541
    %v543 = vlaneseq
    %v544 = vshrl.u32 %v543, 7
    %v545 = vsub.s32 0, %v544
    %v546 = vrot.slane %v542, %v545
    %v547 = vlaneseq
    %v548 = vshrl.u32 %v547, 7
    %v549 = vsub.s32 1, %v548
    %v550 = vrot.slane %v542, %v549
    %v551 = vlaneseq
    %v552 = vshrl.u32 %v551, 7
    %v553 = vsub.s32 2, %v552
    %v554 = vrot.slane %v542, %v553
    %v555 = vlaneseq
    %v556 = vshrl.u32 %v555, 7
    %v557 = vsub.s32 3, %v556
    %v558 = vrot.slane %v542, %v557
    %v559 = vlaneseq
    %v560 = vshrl.u32 %v559, 7
    %v561 = vsub.s32 4, %v560
    %v562 = vrot.slane %v542, %v561
    %v563 = vlaneseq
    %v564 = vshrl.u32 %v563, 7
    %v565 = vsub.s32 5, %v564
    %v566 = vrot.slane %v542, %v565
    %v567 = vlaneseq
    %v568 = vshrl.u32 %v567, 7
    %v569 = vsub.s32 6, %v568
    %v570 = vrot.slane %v542, %v569
    %v571 = vlaneseq
    %v572 = vshrl.u32 %v571, 7
    %v573 = vsub.s32 7, %v572
    %v574 = vrot.slane %v542, %v573
    %v583 = vsub.f32 %v441, %v546
    %v584 = vsub.f32 %v442, %v550
    %v585 = vsub.f32 %v443, %v554
    %v586 = vsub.f32 %v444, %v558
    %v587 = vsub.f32 %v445, %v562
    %v588 = vsub.f32 %v446, %v566
    %v589 = vsub.f32 %v447, %v570
    %v590 = vsub.f32 %v448, %v574
    %v591 = vmul.f32 %v583, 1.442695
    %v592 = vpow.pop %v591
    %v593 = vmul.f32 %v584, 1.442695
    %v594 = vpow.pop %v593
    %v595 = vmul.f32 %v585, 1.442695
    %v596 = vpow.pop %v595
    %v597 = vmul.f32 %v586, 1.442695
    %v598 = vpow.pop %v597
    %v599 = vmul.f32 %v587, 1.442695
    %v600 = vpow.pop %v599
    %v601 = vmul.f32 %v588, 1.442695
    %v602 = vpow.pop %v601
    %v603 = vmul.f32 %v589, 1.442695
    %v604 = vpow.pop %v603
    %v605 = vmul.f32 %v590, 1.442695
    %v606 = vpow.pop %v605
    %v607 = vld [vmem:[#allocation4] sm:$0xff]
    %v608 = vmul.f32 %v538, %v607
    %617 = vset.pattern.permute.xlu0 0
    %618 = vperm.xlu0 %617, %v592
    %v619 = vpop.permute.xlu0 %618
    %620 = vset.pattern.permute.xlu0 0
    %621 = vperm.xlu0 %620, %v594
    %v622 = vpop.permute.xlu0 %621
    %623 = vset.pattern.permute.xlu0 0
    %624 = vperm.xlu0 %623, %v596
    %v625 = vpop.permute.xlu0 %624
    %626 = vset.pattern.permute.xlu0 0
    %627 = vperm.xlu0 %626, %v598
    %v628 = vpop.permute.xlu0 %627
    %629 = vset.pattern.permute.xlu0 0
    %630 = vperm.xlu0 %629, %v600
    %v631 = vpop.permute.xlu0 %630
    %632 = vset.pattern.permute.xlu0 0
    %633 = vperm.xlu0 %632, %v602
    %v634 = vpop.permute.xlu0 %633
    %635 = vset.pattern.permute.xlu0 0
    %636 = vperm.xlu0 %635, %v604
    %v637 = vpop.permute.xlu0 %636
    %638 = vset.pattern.permute.xlu0 0
    %639 = vperm.xlu0 %638, %v606
    %v640 = vpop.permute.xlu0 %639
    %v641 = vlaneseq
    %v642 = vshrl.u32 %v641, 7
    %v643 = vsub.s32 %v483, %v642
    %v644 = vrot.slane %v619, %v643
    %v645 = vlaneseq
    %v646 = vshrl.u32 %v645, 7
    %v647 = vsub.s32 %v483, %v646
    %v648 = vrot.slane %v622, %v647
    %v649 = vlaneseq
    %v650 = vshrl.u32 %v649, 7
    %v651 = vsub.s32 %v483, %v650
    %v652 = vrot.slane %v625, %v651
    %v653 = vlaneseq
    %v654 = vshrl.u32 %v653, 7
    %v655 = vsub.s32 %v483, %v654
    %v656 = vrot.slane %v628, %v655
    %v657 = vlaneseq
    %v658 = vshrl.u32 %v657, 7
    %v659 = vsub.s32 %v483, %v658
    %v660 = vrot.slane %v631, %v659
    %v661 = vlaneseq
    %v662 = vshrl.u32 %v661, 7
    %v663 = vsub.s32 %v483, %v662
    %v664 = vrot.slane %v634, %v663
    %v665 = vlaneseq
    %v666 = vshrl.u32 %v665, 7
    %v667 = vsub.s32 %v483, %v666
    %v668 = vrot.slane %v637, %v667
    %v669 = vlaneseq
    %v670 = vshrl.u32 %v669, 7
    %v671 = vsub.s32 %v483, %v670
    %v672 = vrot.slane %v640, %v671
    %v673 = vsel %vm516, %v648, %v644
    %v674 = vsel %vm518, %v652, %v673
    %v675 = vsel %vm520, %v656, %v674
    %v676 = vsel %vm522, %v660, %v675
    %v677 = vsel %vm524, %v664, %v676
    %v678 = vsel %vm526, %v668, %v677
    %v679 = vsel %vm528, %v672, %v678
    %v681 = vsel %vm531, %v679, 0.0
    %682 = vadd.xlane.f32.xlu0 %v681
    %v683 = vpop.xlane.xlu0 %682
    %v684 = vadd.f32 %v608, %v683
    %vm685 = vcmask 7168
    %686 = vst.msk [vmem:[#allocation4] sm:$0xff] %vm685, %v684
    %v687 = vld [vmem:[#allocation11] sm:$0xff]
    %v688 = vld [vmem:[#allocation11 + $0x8] sm:$0xff]
    %v689 = vld [vmem:[#allocation11 + $0x10] sm:$0xff]
    %v690 = vld [vmem:[#allocation11 + $0x18] sm:$0xff]
    %v691 = vld [vmem:[#allocation11 + $0x20] sm:$0xff]
    %v692 = vld [vmem:[#allocation11 + $0x28] sm:$0xff]
    %v693 = vld [vmem:[#allocation11 + $0x30] sm:$0xff]
    %v694 = vld [vmem:[#allocation11 + $0x38] sm:$0xff]
    %v703 = vmul.f32 %v619, %v687
    %v704 = vmul.f32 %v622, %v688
    %v705 = vmul.f32 %v625, %v689
    %v706 = vmul.f32 %v628, %v690
    %v707 = vmul.f32 %v631, %v691
    %v708 = vmul.f32 %v634, %v692
    %v709 = vmul.f32 %v637, %v693
    %v710 = vmul.f32 %v640, %v694
    %v711 = vrot.slane %v703, 4
    %v712 = vadd.f32 %v703, %v711
    %v713 = vrot.slane %v712, 2
    %v714 = vadd.f32 %v712, %v713
    %v715 = vrot.slane %v714, 1
    %v716 = vadd.f32 %v714, %v715
    %v717 = vrot.slane %v704, 4
    %v718 = vadd.f32 %v704, %v717
    %v719 = vrot.slane %v718, 2
    %v720 = vadd.f32 %v718, %v719
    %v721 = vrot.slane %v720, 1
    %v722 = vadd.f32 %v720, %v721
    %v723 = vrot.slane %v705, 4
    %v724 = vadd.f32 %v705, %v723
    %v725 = vrot.slane %v724, 2
    %v726 = vadd.f32 %v724, %v725
    %v727 = vrot.slane %v726, 1
    %v728 = vadd.f32 %v726, %v727
    %v729 = vrot.slane %v706, 4
    %v730 = vadd.f32 %v706, %v729
    %v731 = vrot.slane %v730, 2
    %v732 = vadd.f32 %v730, %v731
    %v733 = vrot.slane %v732, 1
    %v734 = vadd.f32 %v732, %v733
    %v735 = vrot.slane %v707, 4
    %v736 = vadd.f32 %v707, %v735
    %v737 = vrot.slane %v736, 2
    %v738 = vadd.f32 %v736, %v737
    %v739 = vrot.slane %v738, 1
    %v740 = vadd.f32 %v738, %v739
    %v741 = vrot.slane %v708, 4
    %v742 = vadd.f32 %v708, %v741
    %v743 = vrot.slane %v742, 2
    %v744 = vadd.f32 %v742, %v743
    %v745 = vrot.slane %v744, 1
    %v746 = vadd.f32 %v744, %v745
    %v747 = vrot.slane %v709, 4
    %v748 = vadd.f32 %v709, %v747
    %v749 = vrot.slane %v748, 2
    %v750 = vadd.f32 %v748, %v749
    %v751 = vrot.slane %v750, 1
    %v752 = vadd.f32 %v750, %v751
    %v753 = vrot.slane %v710, 4
    %v754 = vadd.f32 %v710, %v753
    %v755 = vrot.slane %v754, 2
    %v756 = vadd.f32 %v754, %v755
    %v757 = vrot.slane %v756, 1
    %v758 = vadd.f32 %v756, %v757
    %v759 = vld [vmem:[#allocation5] sm:$0xff]
    %761 = vset.pattern.permute.xlu0 0
    %762 = vperm.xlu0 %761, %v538
    %v763 = vpop.permute.xlu0 %762
    %v765 = vmul.f32 %v763, %v759
    %v774 = vsel %vm516, %v722, %v716
    %v775 = vsel %vm518, %v728, %v774
    %v776 = vsel %vm520, %v734, %v775
    %v777 = vsel %vm522, %v740, %v776
    %v778 = vsel %vm524, %v746, %v777
    %v779 = vsel %vm526, %v752, %v778
    %v780 = vsel %vm528, %v758, %v779
    %v782 = vadd.f32 %v765, %v780
    %783 = vst [vmem:[#allocation5] sm:$0xff] %v782
    %784 = vst.msk [vmem:[#allocation3] sm:$0xff] %vm685, %v535
    // Predicated region
    $region78: #{tpu_custom_call.1} parent=1 // pred_check
      %p785 = pneg %p133
    $region79: #{tpu_custom_call.1} parent=1 // pred_check_branch
      %787 = sbr.rel (%p785) target = $region81
    $region80: #{tpu_custom_call.1} parent=1 // pred_region
      %v788 = vld [vmem:[#allocation5] sm:$0xff]
      %v789 = vld [vmem:[#allocation4] sm:$0xff]
      %v790 = vrcp.pop %v789
      %792 = vset.pattern.permute.xlu0 0
      %793 = vperm.xlu0 %792, %v790
      %v794 = vpop.permute.xlu0 %793
      %v796 = vmul.f32 %v788, %v794
      %v797 = vld [vmem:[#allocation6] sm:$0xff]
      %v798 = vld [vmem:[#allocation9] sm:$0xff]
      %v799 = vld [vmem:[#allocation15] sm:$0xff]
      %v800 = vld [vmem:[#allocation15 + $0x8] sm:$0xff]
      %v801 = vld [vmem:[#allocation15 + $0x10] sm:$0xff]
      %v802 = vld [vmem:[#allocation15 + $0x18] sm:$0xff]
      %v803 = vld [vmem:[#allocation15 + $0x20] sm:$0xff]
      %v804 = vld [vmem:[#allocation15 + $0x28] sm:$0xff]
      %v805 = vld [vmem:[#allocation15 + $0x30] sm:$0xff]
      %v806 = vld [vmem:[#allocation15 + $0x38] sm:$0xff]
      %v807 = vld [vmem:[#allocation15 + $0x40] sm:$0xff]
      %v808 = vld [vmem:[#allocation15 + $0x48] sm:$0xff]
      %v809 = vld [vmem:[#allocation15 + $0x50] sm:$0xff]
      %v810 = vld [vmem:[#allocation15 + $0x58] sm:$0xff]
      %v811 = vld [vmem:[#allocation15 + $0x60] sm:$0xff]
      %v812 = vld [vmem:[#allocation15 + $0x68] sm:$0xff]
      %v813 = vld [vmem:[#allocation15 + $0x70] sm:$0xff]
      %v814 = vld [vmem:[#allocation15 + $0x78] sm:$0xff]
      %v815 = vld [vmem:[#allocation15 + $0x80] sm:$0xff]
      %v816 = vld [vmem:[#allocation15 + $0x88] sm:$0xff]
      %v817 = vld [vmem:[#allocation15 + $0x90] sm:$0xff]
      %v818 = vld [vmem:[#allocation15 + $0x98] sm:$0xff]
      %v819 = vld [vmem:[#allocation15 + $0xa0] sm:$0xff]
      %v820 = vld [vmem:[#allocation15 + $0xa8] sm:$0xff]
      %v821 = vld [vmem:[#allocation15 + $0xb0] sm:$0xff]
      %v822 = vld [vmem:[#allocation15 + $0xb8] sm:$0xff]
      %v823 = vld [vmem:[#allocation15 + $0xc0] sm:$0xff]
      %v824 = vld [vmem:[#allocation15 + $0xc8] sm:$0xff]
      %v825 = vld [vmem:[#allocation15 + $0xd0] sm:$0xff]
      %v826 = vld [vmem:[#allocation15 + $0xd8] sm:$0xff]
      %v827 = vld [vmem:[#allocation15 + $0xe0] sm:$0xff]
      %v828 = vld [vmem:[#allocation15 + $0xe8] sm:$0xff]
      %v829 = vld [vmem:[#allocation15 + $0xf0] sm:$0xff]
      %v830 = vld [vmem:[#allocation15 + $0xf8] sm:$0xff]
      %v831 = vld [vmem:[#allocation15 + $0x100] sm:$0xff]
      %v832 = vld [vmem:[#allocation15 + $0x108] sm:$0xff]
      %v833 = vld [vmem:[#allocation15 + $0x110] sm:$0xff]
      %v834 = vld [vmem:[#allocation15 + $0x118] sm:$0xff]
      %v835 = vld [vmem:[#allocation15 + $0x120] sm:$0xff]
      %v836 = vld [vmem:[#allocation15 + $0x128] sm:$0xff]
      %v837 = vld [vmem:[#allocation15 + $0x130] sm:$0xff]
      %v838 = vld [vmem:[#allocation15 + $0x138] sm:$0xff]
      %v839 = vld [vmem:[#allocation15 + $0x140] sm:$0xff]
      %v840 = vld [vmem:[#allocation15 + $0x148] sm:$0xff]
      %v841 = vld [vmem:[#allocation15 + $0x150] sm:$0xff]
      %v842 = vld [vmem:[#allocation15 + $0x158] sm:$0xff]
      %v843 = vld [vmem:[#allocation15 + $0x160] sm:$0xff]
      %v844 = vld [vmem:[#allocation15 + $0x168] sm:$0xff]
      %v845 = vld [vmem:[#allocation15 + $0x170] sm:$0xff]
      %v846 = vld [vmem:[#allocation15 + $0x178] sm:$0xff]
      %v847 = vld [vmem:[#allocation15 + $0x180] sm:$0xff]
      %v848 = vld [vmem:[#allocation15 + $0x188] sm:$0xff]
      %v849 = vld [vmem:[#allocation15 + $0x190] sm:$0xff]
      %v850 = vld [vmem:[#allocation15 + $0x198] sm:$0xff]
      %v851 = vld [vmem:[#allocation15 + $0x1a0] sm:$0xff]
      %v852 = vld [vmem:[#allocation15 + $0x1a8] sm:$0xff]
      %v853 = vld [vmem:[#allocation15 + $0x1b0] sm:$0xff]
      %v854 = vld [vmem:[#allocation15 + $0x1b8] sm:$0xff]
      %v855 = vld [vmem:[#allocation15 + $0x1c0] sm:$0xff]
      %v856 = vld [vmem:[#allocation15 + $0x1c8] sm:$0xff]
      %v857 = vld [vmem:[#allocation15 + $0x1d0] sm:$0xff]
      %v858 = vld [vmem:[#allocation15 + $0x1d8] sm:$0xff]
      %v859 = vld [vmem:[#allocation15 + $0x1e0] sm:$0xff]
      %v860 = vld [vmem:[#allocation15 + $0x1e8] sm:$0xff]
      %v861 = vld [vmem:[#allocation15 + $0x1f0] sm:$0xff]
      %v862 = vld [vmem:[#allocation15 + $0x1f8] sm:$0xff]
      %v863 = vld [vmem:[#allocation15 + $0x200] sm:$0xff]
      %v864 = vld [vmem:[#allocation15 + $0x208] sm:$0xff]
      %v865 = vld [vmem:[#allocation15 + $0x210] sm:$0xff]
      %v866 = vld [vmem:[#allocation15 + $0x218] sm:$0xff]
      %v867 = vld [vmem:[#allocation15 + $0x220] sm:$0xff]
      %v868 = vld [vmem:[#allocation15 + $0x228] sm:$0xff]
      %v869 = vld [vmem:[#allocation15 + $0x230] sm:$0xff]
      %v870 = vld [vmem:[#allocation15 + $0x238] sm:$0xff]
      %v871 = vld [vmem:[#allocation15 + $0x240] sm:$0xff]
      %v872 = vld [vmem:[#allocation15 + $0x248] sm:$0xff]
      %v873 = vld [vmem:[#allocation15 + $0x250] sm:$0xff]
      %v874 = vld [vmem:[#allocation15 + $0x258] sm:$0xff]
      %v875 = vld [vmem:[#allocation15 + $0x260] sm:$0xff]
      %v876 = vld [vmem:[#allocation15 + $0x268] sm:$0xff]
      %v877 = vld [vmem:[#allocation15 + $0x270] sm:$0xff]
      %v878 = vld [vmem:[#allocation15 + $0x278] sm:$0xff]
      %v879 = vld [vmem:[#allocation15 + $0x280] sm:$0xff]
      %v880 = vld [vmem:[#allocation15 + $0x288] sm:$0xff]
      %v881 = vld [vmem:[#allocation15 + $0x290] sm:$0xff]
      %v882 = vld [vmem:[#allocation15 + $0x298] sm:$0xff]
      %v883 = vld [vmem:[#allocation15 + $0x2a0] sm:$0xff]
      %v884 = vld [vmem:[#allocation15 + $0x2a8] sm:$0xff]
      %v885 = vld [vmem:[#allocation15 + $0x2b0] sm:$0xff]
      %v886 = vld [vmem:[#allocation15 + $0x2b8] sm:$0xff]
      %v887 = vld [vmem:[#allocation15 + $0x2c0] sm:$0xff]
      %v888 = vld [vmem:[#allocation15 + $0x2c8] sm:$0xff]
      %v889 = vld [vmem:[#allocation15 + $0x2d0] sm:$0xff]
      %v890 = vld [vmem:[#allocation15 + $0x2d8] sm:$0xff]
      %v891 = vld [vmem:[#allocation15 + $0x2e0] sm:$0xff]
      %v892 = vld [vmem:[#allocation15 + $0x2e8] sm:$0xff]
      %v893 = vld [vmem:[#allocation15 + $0x2f0] sm:$0xff]
      %v894 = vld [vmem:[#allocation15 + $0x2f8] sm:$0xff]
      %v895 = vld [vmem:[%s9] sm:$0x7]
      %v897 = vlaneseq
      %v898 = vshrl.u32 %v897, 7
      %v899 = vsub.s32 0, %v898
      %v900 = vrot.slane %v895, %v899
      %v901 = vlaneseq
      %v902 = vshrl.u32 %v901, 7
      %v903 = vsub.s32 1, %v902
      %v904 = vrot.slane %v895, %v903
      %v905 = vlaneseq
      %v906 = vshrl.u32 %v905, 7
      %v907 = vsub.s32 2, %v906
      %v908 = vrot.slane %v895, %v907
      %912 = vmatprep.subr.mxu0 %v800
      %913 = vmatpush1.msra.mxu0 %v799
      %914 = vmatprep.subr.mxu0 %v803
      %915 = vmatpush1.msra.mxu0 %v802
      %916 = vmatprep.subr.mxu0 %v806
      %917 = vmatpush1.msra.mxu0 %v805
      %918 = vmatprep.subr.mxu0 %v809
      %919 = vmatpush1.msra.mxu0 %v808
      %920 = vmatprep.subr.mxu0 %v812
      %921 = vmatpush1.msra.mxu0 %v811
      %922 = vmatprep.subr.mxu0 %v815
      %923 = vmatpush1.msra.mxu0 %v814
      %924 = vmatprep.subr.mxu0 %v818
      %925 = vmatpush1.msra.mxu0 %v817
      %926 = vmatprep.subr.mxu0 %v821
      %927 = vmatpush1.msra.mxu0 %v820
      %928 = vmatprep.subr.mxu0 %v824
      %929 = vmatpush1.msra.mxu0 %v823
      %930 = vmatprep.subr.mxu0 %v827
      %931 = vmatpush1.msra.mxu0 %v826
      %932 = vmatprep.subr.mxu0 %v830
      %933 = vmatpush1.msra.mxu0 %v829
      %934 = vmatprep.subr.mxu0 %v833
      %935 = vmatpush1.msra.mxu0 %v832
      %936 = vmatprep.subr.mxu0 %v836
      %937 = vmatpush1.msra.mxu0 %v835
      %938 = vmatprep.subr.mxu0 %v839
      %939 = vmatpush1.msra.mxu0 %v838
      %940 = vmatprep.subr.mxu0 %v842
      %941 = vmatpush1.msra.mxu0 %v841
      %942 = vmatprep.subr.mxu0 %v845
      %943 = vmatpush1.msra.mxu0 %v844
      %944 = vmatprep.subr.mxu0 %v848
      %945 = vmatpush1.msra.mxu0 %v847
      %946 = vmatprep.subr.mxu0 %v851
      %947 = vmatpush1.msra.mxu0 %v850
      %948 = vmatprep.subr.mxu0 %v854
      %949 = vmatpush1.msra.mxu0 %v853
      %950 = vmatprep.subr.mxu0 %v857
      %951 = vmatpush1.msra.mxu0 %v856
      %952 = vmatprep.subr.mxu0 %v860
      %953 = vmatpush1.msra.mxu0 %v859
      %954 = vmatprep.subr.mxu0 %v863
      %955 = vmatpush1.msra.mxu0 %v862
      %956 = vmatprep.subr.mxu0 %v866
      %957 = vmatpush1.msra.mxu0 %v865
      %958 = vmatprep.subr.mxu0 %v869
      %959 = vmatpush1.msra.mxu0 %v868
      %960 = vmatprep.subr.mxu0 %v872
      %961 = vmatpush1.msra.mxu0 %v871
      %962 = vmatprep.subr.mxu0 %v875
      %963 = vmatpush1.msra.mxu0 %v874
      %964 = vmatprep.subr.mxu0 %v878
      %965 = vmatpush1.msra.mxu0 %v877
      %966 = vmatprep.subr.mxu0 %v881
      %967 = vmatpush1.msra.mxu0 %v880
      %968 = vmatprep.subr.mxu0 %v884
      %969 = vmatpush1.msra.mxu0 %v883
      %970 = vmatprep.subr.mxu0 %v887
      %971 = vmatpush1.msra.mxu0 %v886
      %972 = vmatprep.subr.mxu0 %v890
      %973 = vmatpush1.msra.mxu0 %v889
      %974 = vmatprep.subr.mxu0 %v893
      %975 = vmatpush1.msra.mxu0 %v892
      %976 = vmatprep.mubr.f32.mxu0 %v796
      %977 = vmatmul.mubr.f32.gmra.mrb[0].mxu0 %v797
      %v978 = vpop.f32.mrb[0].mxu0
      %v979 = vadd.f32 %v900, %v978
      %v980 = vpop.f32.mrb[0].mxu0
      %v981 = vadd.f32 %v904, %v980
      %982 = vdwg.mxu0
      %983 = vmatprep.subr.mxu0 0.0
      %984 = vmatpush1.msra.mxu0 %v801
      %985 = vmatprep.subr.mxu0 0.0
      %986 = vmatpush1.msra.mxu0 %v804
      %987 = vmatprep.subr.mxu0 0.0
      %988 = vmatpush1.msra.mxu0 %v807
      %989 = vmatprep.subr.mxu0 0.0
      %990 = vmatpush1.msra.mxu0 %v810
      %991 = vmatprep.subr.mxu0 0.0
      %992 = vmatpush1.msra.mxu0 %v813
      %993 = vmatprep.subr.mxu0 0.0
      %994 = vmatpush1.msra.mxu0 %v816
      %995 = vmatprep.subr.mxu0 0.0
      %996 = vmatpush1.msra.mxu0 %v819
      %997 = vmatprep.subr.mxu0 0.0
      %998 = vmatpush1.msra.mxu0 %v822
      %999 = vmatprep.subr.mxu0 0.0
      %1000 = vmatpush1.msra.mxu0 %v825
      %1001 = vmatprep.subr.mxu0 0.0
      %1002 = vmatpush1.msra.mxu0 %v828
      %1003 = vmatprep.subr.mxu0 0.0
      %1004 = vmatpush1.msra.mxu0 %v831
      %1005 = vmatprep.subr.mxu0 0.0
      %1006 = vmatpush1.msra.mxu0 %v834
      %1007 = vmatprep.subr.mxu0 0.0
      %1008 = vmatpush1.msra.mxu0 %v837
      %1009 = vmatprep.subr.mxu0 0.0
      %1010 = vmatpush1.msra.mxu0 %v840
      %1011 = vmatprep.subr.mxu0 0.0
      %1012 = vmatpush1.msra.mxu0 %v843
      %1013 = vmatprep.subr.mxu0 0.0
      %1014 = vmatpush1.msra.mxu0 %v846
      %1015 = vmatprep.subr.mxu0 0.0
      %1016 = vmatpush1.msra.mxu0 %v849
      %1017 = vmatprep.subr.mxu0 0.0
      %1018 = vmatpush1.msra.mxu0 %v852
      %1019 = vmatprep.subr.mxu0 0.0
      %1020 = vmatpush1.msra.mxu0 %v855
      %1021 = vmatprep.subr.mxu0 0.0
      %1022 = vmatpush1.msra.mxu0 %v858
      %1023 = vmatprep.subr.mxu0 0.0
      %1024 = vmatpush1.msra.mxu0 %v861
      %1025 = vmatprep.subr.mxu0 0.0
      %1026 = vmatpush1.msra.mxu0 %v864
      %1027 = vmatprep.subr.mxu0 0.0
      %1028 = vmatpush1.msra.mxu0 %v867
      %1029 = vmatprep.subr.mxu0 0.0
      %1030 = vmatpush1.msra.mxu0 %v870
      %1031 = vmatprep.subr.mxu0 0.0
      %1032 = vmatpush1.msra.mxu0 %v873
      %1033 = vmatprep.subr.mxu0 0.0
      %1034 = vmatpush1.msra.mxu0 %v876
      %1035 = vmatprep.subr.mxu0 0.0
      %1036 = vmatpush1.msra.mxu0 %v879
      %1037 = vmatprep.subr.mxu0 0.0
      %1038 = vmatpush1.msra.mxu0 %v882
      %1039 = vmatprep.subr.mxu0 0.0
      %1040 = vmatpush1.msra.mxu0 %v885
      %1041 = vmatprep.subr.mxu0 0.0
      %1042 = vmatpush1.msra.mxu0 %v888
      %1043 = vmatprep.subr.mxu0 0.0
      %1044 = vmatpush1.msra.mxu0 %v891
      %1045 = vmatprep.subr.mxu0 0.0
      %1046 = vmatpush1.msra.mxu0 %v894
      %1047 = vmatprep.mubr.f32.mxu0 %v796
      %1048 = vmatmul.mubr.f32.gmra.mrb[0].mxu0 %v797
      %v1049 = vpop.f32.mrb[0].mxu0
      %v1050 = vadd.f32 %v908, %v1049
      %v1051 = vpop.f32.mrb[0].mxu0
      %1052 = vdwg.mxu0
      %v1053 = vld [vmem:[#allocation17] sm:$0xff]
      %v1054 = vld [vmem:[#allocation17 + $0x8] sm:$0xff]
      %v1055 = vld [vmem:[#allocation17 + $0x10] sm:$0xff]
      %v1056 = vld [vmem:[#allocation17 + $0x18] sm:$0xff]
      %v1057 = vld [vmem:[#allocation17 + $0x20] sm:$0xff]
      %v1058 = vld [vmem:[#allocation17 + $0x28] sm:$0xff]
      %v1059 = vld [vmem:[#allocation17 + $0x30] sm:$0xff]
      %v1060 = vld [vmem:[#allocation17 + $0x38] sm:$0xff]
      %v1061 = vld [vmem:[#allocation17 + $0x40] sm:$0xff]
      %v1062 = vld [vmem:[#allocation17 + $0x48] sm:$0xff]
      %v1063 = vld [vmem:[#allocation17 + $0x50] sm:$0xff]
      %v1064 = vld [vmem:[#allocation17 + $0x58] sm:$0xff]
      %v1065 = vld [vmem:[#allocation17 + $0x60] sm:$0xff]
      %v1066 = vld [vmem:[#allocation17 + $0x68] sm:$0xff]
      %v1067 = vld [vmem:[#allocation17 + $0x70] sm:$0xff]
      %v1068 = vld [vmem:[#allocation17 + $0x78] sm:$0xff]
      %v1069 = vld [vmem:[#allocation17 + $0x80] sm:$0xff]
      %v1070 = vld [vmem:[#allocation17 + $0x88] sm:$0xff]
      %v1071 = vld [vmem:[#allocation17 + $0x90] sm:$0xff]
      %v1072 = vld [vmem:[#allocation17 + $0x98] sm:$0xff]
      %v1073 = vld [vmem:[#allocation17 + $0xa0] sm:$0xff]
      %v1074 = vld [vmem:[#allocation17 + $0xa8] sm:$0xff]
      %v1075 = vld [vmem:[#allocation17 + $0xb0] sm:$0xff]
      %v1076 = vld [vmem:[#allocation17 + $0xb8] sm:$0xff]
      %v1077 = vld [vmem:[#allocation17 + $0xc0] sm:$0xff]
      %v1078 = vld [vmem:[#allocation17 + $0xc8] sm:$0xff]
      %v1079 = vld [vmem:[#allocation17 + $0xd0] sm:$0xff]
      %v1080 = vld [vmem:[#allocation17 + $0xd8] sm:$0xff]
      %v1081 = vld [vmem:[#allocation17 + $0xe0] sm:$0xff]
      %v1082 = vld [vmem:[#allocation17 + $0xe8] sm:$0xff]
      %v1083 = vld [vmem:[#allocation17 + $0xf0] sm:$0xff]
      %v1084 = vld [vmem:[#allocation17 + $0xf8] sm:$0xff]
      %v1085 = vld [vmem:[#allocation17 + $0x100] sm:$0xff]
      %v1086 = vld [vmem:[#allocation17 + $0x108] sm:$0xff]
      %v1087 = vld [vmem:[#allocation17 + $0x110] sm:$0xff]
      %v1088 = vld [vmem:[#allocation17 + $0x118] sm:$0xff]
      %v1089 = vld [vmem:[#allocation17 + $0x120] sm:$0xff]
      %v1090 = vld [vmem:[#allocation17 + $0x128] sm:$0xff]
      %v1091 = vld [vmem:[#allocation17 + $0x130] sm:$0xff]
      %v1092 = vld [vmem:[#allocation17 + $0x138] sm:$0xff]
      %v1093 = vld [vmem:[#allocation17 + $0x140] sm:$0xff]
      %v1094 = vld [vmem:[#allocation17 + $0x148] sm:$0xff]
      %v1095 = vld [vmem:[#allocation17 + $0x150] sm:$0xff]
      %v1096 = vld [vmem:[#allocation17 + $0x158] sm:$0xff]
      %v1097 = vld [vmem:[#allocation17 + $0x160] sm:$0xff]
      %v1098 = vld [vmem:[#allocation17 + $0x168] sm:$0xff]
      %v1099 = vld [vmem:[#allocation17 + $0x170] sm:$0xff]
      %v1100 = vld [vmem:[#allocation17 + $0x178] sm:$0xff]
      %v1101 = vld [vmem:[%s10] sm:$0x7]
      %v1103 = vlaneseq
      %v1104 = vshrl.u32 %v1103, 7
      %v1105 = vsub.s32 0, %v1104
      %v1106 = vrot.slane %v1101, %v1105
      %v1107 = vlaneseq
      %v1108 = vshrl.u32 %v1107, 7
      %v1109 = vsub.s32 1, %v1108
      %v1110 = vrot.slane %v1101, %v1109
      %v1111 = vlaneseq
      %v1112 = vshrl.u32 %v1111, 7
      %v1113 = vsub.s32 2, %v1112
      %v1114 = vrot.slane %v1101, %v1113
      %1118 = vmatprep.subr.mxu0 %v1054
      %1119 = vmatpush1.msra.mxu0 %v1053
      %1120 = vmatprep.subr.mxu0 %v1057
      %1121 = vmatpush1.msra.mxu0 %v1056
      %1122 = vmatprep.subr.mxu0 %v1060
      %1123 = vmatpush1.msra.mxu0 %v1059
      %1124 = vmatprep.subr.mxu0 %v1063
      %1125 = vmatpush1.msra.mxu0 %v1062
      %1126 = vmatprep.subr.mxu0 %v1066
      %1127 = vmatpush1.msra.mxu0 %v1065
      %1128 = vmatprep.subr.mxu0 %v1069
      %1129 = vmatpush1.msra.mxu0 %v1068
      %1130 = vmatprep.subr.mxu0 %v1072
      %1131 = vmatpush1.msra.mxu0 %v1071
      %1132 = vmatprep.subr.mxu0 %v1075
      %1133 = vmatpush1.msra.mxu0 %v1074
      %1134 = vmatprep.subr.mxu0 %v1078
      %1135 = vmatpush1.msra.mxu0 %v1077
      %1136 = vmatprep.subr.mxu0 %v1081
      %1137 = vmatpush1.msra.mxu0 %v1080
      %1138 = vmatprep.subr.mxu0 %v1084
      %1139 = vmatpush1.msra.mxu0 %v1083
      %1140 = vmatprep.subr.mxu0 %v1087
      %1141 = vmatpush1.msra.mxu0 %v1086
      %1142 = vmatprep.subr.mxu0 %v1090
      %1143 = vmatpush1.msra.mxu0 %v1089
      %1144 = vmatprep.subr.mxu0 %v1093
      %1145 = vmatpush1.msra.mxu0 %v1092
      %1146 = vmatprep.subr.mxu0 %v1096
      %1147 = vmatpush1.msra.mxu0 %v1095
      %1148 = vmatprep.subr.mxu0 %v1099
      %1149 = vmatpush1.msra.mxu0 %v1098
      %1150 = vmatprep.subr.mxu0 0.0
      %1151 = vmatpush1.msra.mxu0 0.0
      %1152 = vmatprep.subr.mxu0 0.0
      %1153 = vmatpush1.msra.mxu0 0.0
      %1154 = vmatprep.subr.mxu0 0.0
      %1155 = vmatpush1.msra.mxu0 0.0
      %1156 = vmatprep.subr.mxu0 0.0
      %1157 = vmatpush1.msra.mxu0 0.0
      %1158 = vmatprep.subr.mxu0 0.0
      %1159 = vmatpush1.msra.mxu0 0.0
      %1160 = vmatprep.subr.mxu0 0.0
      %1161 = vmatpush1.msra.mxu0 0.0
      %1162 = vmatprep.subr.mxu0 0.0
      %1163 = vmatpush1.msra.mxu0 0.0
      %1164 = vmatprep.subr.mxu0 0.0
      %1165 = vmatpush1.msra.mxu0 0.0
      %1166 = vmatprep.subr.mxu0 0.0
      %1167 = vmatpush1.msra.mxu0 0.0
      %1168 = vmatprep.subr.mxu0 0.0
      %1169 = vmatpush1.msra.mxu0 0.0
      %1170 = vmatprep.subr.mxu0 0.0
      %1171 = vmatpush1.msra.mxu0 0.0
      %1172 = vmatprep.subr.mxu0 0.0
      %1173 = vmatpush1.msra.mxu0 0.0
      %1174 = vmatprep.subr.mxu0 0.0
      %1175 = vmatpush1.msra.mxu0 0.0
      %1176 = vmatprep.subr.mxu0 0.0
      %1177 = vmatpush1.msra.mxu0 0.0
      %1178 = vmatprep.subr.mxu0 0.0
      %1179 = vmatpush1.msra.mxu0 0.0
      %1180 = vmatprep.subr.mxu0 0.0
      %1181 = vmatpush1.msra.mxu0 0.0
      %1182 = vmatprep.mubr.f32.mxu0 0.0
      %1183 = vmatmul.mubr.f32.gmra.mrb[0].mxu0 %v798
      %v1184 = vpop.f32.mrb[0].mxu0
      %v1185 = vadd.f32 %v1106, %v1184
      %v1186 = vpop.f32.mrb[0].mxu0
      %v1187 = vadd.f32 %v1110, %v1186
      %1188 = vdwg.mxu0
      %1189 = vmatprep.subr.mxu0 0.0
      %1190 = vmatpush1.msra.mxu0 %v1055
      %1191 = vmatprep.subr.mxu0 0.0
      %1192 = vmatpush1.msra.mxu0 %v1058
      %1193 = vmatprep.subr.mxu0 0.0
      %1194 = vmatpush1.msra.mxu0 %v1061
      %1195 = vmatprep.subr.mxu0 0.0
      %1196 = vmatpush1.msra.mxu0 %v1064
      %1197 = vmatprep.subr.mxu0 0.0
      %1198 = vmatpush1.msra.mxu0 %v1067
      %1199 = vmatprep.subr.mxu0 0.0
      %1200 = vmatpush1.msra.mxu0 %v1070
      %1201 = vmatprep.subr.mxu0 0.0
      %1202 = vmatpush1.msra.mxu0 %v1073
      %1203 = vmatprep.subr.mxu0 0.0
      %1204 = vmatpush1.msra.mxu0 %v1076
      %1205 = vmatprep.subr.mxu0 0.0
      %1206 = vmatpush1.msra.mxu0 %v1079
      %1207 = vmatprep.subr.mxu0 0.0
      %1208 = vmatpush1.msra.mxu0 %v1082
      %1209 = vmatprep.subr.mxu0 0.0
      %1210 = vmatpush1.msra.mxu0 %v1085
      %1211 = vmatprep.subr.mxu0 0.0
      %1212 = vmatpush1.msra.mxu0 %v1088
      %1213 = vmatprep.subr.mxu0 0.0
      %1214 = vmatpush1.msra.mxu0 %v1091
      %1215 = vmatprep.subr.mxu0 0.0
      %1216 = vmatpush1.msra.mxu0 %v1094
      %1217 = vmatprep.subr.mxu0 0.0
      %1218 = vmatpush1.msra.mxu0 %v1097
      %1219 = vmatprep.subr.mxu0 0.0
      %1220 = vmatpush1.msra.mxu0 %v1100
      %1221 = vmatprep.subr.mxu0 0.0
      %1222 = vmatpush1.msra.mxu0 0.0
      %1223 = vmatprep.subr.mxu0 0.0
      %1224 = vmatpush1.msra.mxu0 0.0
      %1225 = vmatprep.subr.mxu0 0.0
      %1226 = vmatpush1.msra.mxu0 0.0
      %1227 = vmatprep.subr.mxu0 0.0
      %1228 = vmatpush1.msra.mxu0 0.0
      %1229 = vmatprep.subr.mxu0 0.0
      %1230 = vmatpush1.msra.mxu0 0.0
      %1231 = vmatprep.subr.mxu0 0.0
      %1232 = vmatpush1.msra.mxu0 0.0
      %1233 = vmatprep.subr.mxu0 0.0
      %1234 = vmatpush1.msra.mxu0 0.0
      %1235 = vmatprep.subr.mxu0 0.0
      %1236 = vmatpush1.msra.mxu0 0.0
      %1237 = vmatprep.subr.mxu0 0.0
      %1238 = vmatpush1.msra.mxu0 0.0
      %1239 = vmatprep.subr.mxu0 0.0
      %1240 = vmatpush1.msra.mxu0 0.0
      %1241 = vmatprep.subr.mxu0 0.0
      %1242 = vmatpush1.msra.mxu0 0.0
      %1243 = vmatprep.subr.mxu0 0.0
      %1244 = vmatpush1.msra.mxu0 0.0
      %1245 = vmatprep.subr.mxu0 0.0
      %1246 = vmatpush1.msra.mxu0 0.0
      %1247 = vmatprep.subr.mxu0 0.0
      %1248 = vmatpush1.msra.mxu0 0.0
      %1249 = vmatprep.subr.mxu0 0.0
      %1250 = vmatpush1.msra.mxu0 0.0
      %1251 = vmatprep.subr.mxu0 0.0
      %1252 = vmatpush1.msra.mxu0 0.0
      %1253 = vmatprep.mubr.f32.mxu0 0.0
      %1254 = vmatmul.mubr.f32.gmra.mrb[0].mxu0 %v798
      %v1255 = vpop.f32.mrb[0].mxu0
      %v1256 = vadd.f32 %v1114, %v1255
      %v1257 = vpop.f32.mrb[0].mxu0
      %1258 = vdwg.mxu0
      %v1259 = vadd.f32 %v979, %v1185
      %v1260 = vxor.u32 %v1259, 2147483648
      %v1261 = vmul.f32 %v1260, 1.442695
      %v1262 = vpow.pop %v1261
      %v1263 = vadd.f32 %v1262, 1.0
      %v1264 = vrcp.pop %v1263
      %v1265 = vmul.f32 1.0, %v1264
      %v1266 = vadd.f32 %v981, %v1187
      %v1267 = vxor.u32 %v1266, 2147483648
      %v1268 = vmul.f32 %v1267, 1.442695
      %v1269 = vpow.pop %v1268
      %v1270 = vadd.f32 %v1269, 1.0
      %v1271 = vrcp.pop %v1270
      %v1272 = vmul.f32 1.0, %v1271
      %v1273 = vmul.f32 %v1265, %v1256
      %v1274 = vadd.f32 %v1050, %v1273
      %v1275 = vtanh.pop %v1274
      %v1276 = vsub.f32 1.0, %v1272
      %v1277 = vmul.f32 %v1276, %v1275
      %v1278 = vmul.f32 %v1272, %v798
      %v1279 = vadd.f32 %v1277, %v1278
      %1280 = vst [vmem:[#allocation18] sm:$0xff] %v1279
      %1281 = vst [vmem:[#allocation19] sm:$0xff] %v797
      %1282 = vst [vmem:[#allocation19 + $0x8] sm:$0xff] %v1279
      %1283 = vst [vmem:[#allocation19 + $0x10] sm:$0xff] %v796
    $region81: #{tpu_custom_call.1} parent=1 // pred_fallthru
      _
    // Predicated region
    $region82: #{tpu_custom_call.1} parent=1 // pred_check
      _
    $region83: #{tpu_custom_call.1} parent=1 // pred_check_branch
      %1285 = sbr.rel (0) target = $region85
    $region84: #{tpu_custom_call.1} parent=1 // pred_region
      %s1287 = ssub.s32 128, 128
      %1288 = vsyncadd [#allocation8], %s1287
      %s1290 = sshll.u32 [#allocation18], 4
      %s1291 = int_to_ptr.vmem [resolvable:$true] %s1290
      %1293 = dma.vmem_to_hbm [thread:$0]  %s1291, 128, %s11, [#allocation8]
    $region85: #{tpu_custom_call.1} parent=1 // pred_fallthru
      _
    // Predicated region
    $region86: #{tpu_custom_call.1} parent=1 // pred_check
      _
    $region87: #{tpu_custom_call.1} parent=1 // pred_check_branch
      %1295 = sbr.rel (0) target = $region89
    $region88: #{tpu_custom_call.1} parent=1 // pred_region
      %s1297 = ssub.s32 384, 384
      %1298 = vsyncadd [#allocation20], %s1297
      %s1300 = sshll.u32 [#allocation19], 4
      %s1301 = int_to_ptr.vmem [resolvable:$true] %s1300
      %1303 = dma.vmem_to_hbm [thread:$0]  %s1301, 384, %s12, [#allocation20]
    $region89: #{tpu_custom_call.1} parent=1 // pred_fallthru
      _
    // Predicated region
    $region90: #{tpu_custom_call.1} parent=1 // pred_check
      _
    $region91: #{tpu_custom_call.1} parent=1 // pred_check_branch
      %1305 = sbr.rel (0) target = $region93
    $region92: #{tpu_custom_call.1} parent=1 // pred_region
      %1306 = dma.done [#allocation8], 128
    $region93: #{tpu_custom_call.1} parent=1 // pred_fallthru
      _
    // Predicated region
    $region94: #{tpu_custom_call.1} parent=1 // pred_check
      _
    $region95: #{tpu_custom_call.1} parent=1 // pred_check_branch
      %1308 = sbr.rel (0) target = $region97
    $region96: #{tpu_custom_call.1} parent=1 // pred_region
      %1309 = dma.done [#allocation20], 384
    $region97: #{tpu_custom_call.1} parent=1 // pred_fallthru
      _
    %1310 = vsyncpa [#allocation7], 1
    %1311 = vsyncpa [#allocation10], 1
    %1312 = vsyncpa [#allocation13], 1
    %1313 = vsyncpa [#allocation16], 1
    %1314 = vsyncpa [#allocation8], 1
    %1315 = vsyncpa [#allocation20], 1

</llo_original>
